<compile_context>
chip_gen: v6e
topology: v6e:2x2x1
jax: 0.10.0
libtpu: 0.0.40
codegen_flags: <defaults>
</compile_context>

<pallas_src>
import jax
import jax.numpy as jnp
from jax.experimental import pallas as pl
from jax.experimental.pallas import tpu as pltpu

_BN_EPS = 1e-5


# ----------------------------- fused Pallas kernel ---------------------------

def _make_fused_kernel(cfg, block_b, out_transposed):
    n_exp_layers = cfg["n_expert_layers"]
    n_tow_layers = cfg["n_tower_layers"]
    NT = cfg["num_tasks"]
    total_card = cfg["total_card"]
    offsets = cfg["offsets"]
    f32 = jnp.float32
    bf16 = jnp.bfloat16

    def kernel(*refs):
        it = iter(refs)
        dense_ref = next(it)                        # (Bb, num_dense)   bf16
        sparse_ref = next(it)                       # (Bb, n_sparse)    int32
        wd = next(it); bd = next(it)                # dense embedding linear
        w0d = next(it); w0s = next(it); b0 = next(it)   # expert layer 0
        exp_rest = [(next(it), next(it)) for _ in range(n_exp_layers - 1)]
        wgd = next(it); wgs = next(it); bg = next(it)   # gates (all tasks)
        sum_mat = next(it); expand_e = next(it); expand_t = next(it)
        tow = [(next(it), next(it)) for _ in range(n_tow_layers)]
        wh = next(it); bh = next(it)
        o_ref = next(it)

        # --- fused sparse-embedding lookup: multi-hot encoding of the ids.
        # The block-diagonal tables are pre-folded into w0s / wgs, so one
        # matmul below does lookup + linear on the MXU.
        # TODO(synk): for million-row tables switch to PrefetchScalarGridSpec
        # + pl.Element row gather instead of the one-hot matmul.
        idx = sparse_ref[...]
        iota = jax.lax.broadcasted_iota(jnp.int32, (block_b, total_card), 1)
        mh = jnp.zeros((block_b, total_card), bf16)
        for i, off in enumerate(offsets):
            mh = mh + (iota == (idx[:, i:i + 1] + off)).astype(bf16)

        # --- dense embedding: Linear(num_dense, hidden)
        demb = jnp.dot(dense_ref[...], wd[...],
                       preferred_element_type=f32) + bd[...]
        demb_b = demb.astype(bf16)

        # --- expert layer 0: all experts in one matmul (BN folded); the
        # activation concat [demb | semb] is expressed by splitting weight rows.
        h = (jnp.dot(demb_b, w0d[...], preferred_element_type=f32)
             + jnp.dot(mh, w0s[...], preferred_element_type=f32)
             + b0[...])
        h = jnp.maximum(h, 0.0)
        # --- deeper expert layers: block-diagonal weights, one matmul each.
        for (w, b) in exp_rest:
            h = jnp.maximum(
                jnp.dot(h.astype(bf16), w[...], preferred_element_type=f32)
                + b[...], 0.0)
        # h: (Bb, NE*F) expert outputs, never leaves VMEM.

        # --- all-task gate logits in one matmul: (Bb, NT*NE)
        glog = (jnp.dot(demb_b, wgd[...], preferred_element_type=f32)
                + jnp.dot(mh, wgs[...], preferred_element_type=f32)
                + bg[...])

        # --- per-task softmax + mixture, MXU/VPU only (no lane slicing).
        # Subtracting the shared per-row max leaves every per-task softmax
        # unchanged and keeps exp() in range.
        e = jnp.exp(glog - jnp.max(glog, axis=-1, keepdims=True))
        denom = jnp.dot(e, sum_mat[...], preferred_element_type=f32)   # (Bb, NT)
        inv = 1.0 / denom                                              # exact
        p_full = (jnp.dot(e, expand_e[...], preferred_element_type=f32)
                  * jnp.dot(inv, expand_t[...], preferred_element_type=f32))
        mixed = p_full * jnp.tile(h, (1, NT))                          # (Bb, NT*NE*F)
        # sum over experts is folded into the first post-mixture linear below.

        # --- towers for all tasks (block-diagonal, BN folded).
        x = mixed
        for (w, b) in tow:
            x = jnp.maximum(
                jnp.dot(x.astype(bf16), w[...], preferred_element_type=f32)
                + b[...], 0.0)

        # --- heads (block-diagonal) + sigmoid.
        y = jnp.dot(x.astype(bf16), wh[...], preferred_element_type=f32) + bh[...]
        y = jax.nn.sigmoid(y)                                          # (Bb, NT)
        if out_transposed:
            o_ref[...] = y.T                                           # lane-dense (NT, Bb)
        else:
            o_ref[...] = y

    return kernel


# ----------------------------- parameter setup -------------------------------

def init_raw_params(key, num_dense, cards, hidden, expert_dims, tower_dims,
                    num_tasks, num_experts):
    """PyTorch-layout-equivalent raw params (Linear weights stored (in, out))."""
    keys = iter(jax.random.split(key, 1024))

    def lin(in_d, out_d):
        lim = 1.0 / float(in_d) ** 0.5
        w = jax.random.uniform(next(keys), (in_d, out_d), jnp.float32, -lim, lim)
        b = jax.random.uniform(next(keys), (out_d,), jnp.float32, -lim, lim)
        return {"w": w, "b": b}

    def bn(d):
        # non-trivial BN stats so the Linear+BN fold is actually exercised
        return {
            "gamma": jax.random.uniform(next(keys), (d,), jnp.float32, 0.5, 1.5),
            "beta": 0.1 * jax.random.normal(next(keys), (d,), jnp.float32),
            "mean": 0.1 * jax.random.normal(next(keys), (d,), jnp.float32),
            "var": jax.random.uniform(next(keys), (d,), jnp.float32, 0.5, 1.5),
        }

    def mlp(in_d, dims, output_layer):
        layers, d = [], in_d
        for hdim in dims:
            layers.append({"lin": lin(d, hdim), "bn": bn(hdim)})
            d = hdim
        head = lin(d, 1) if output_layer else None
        return {"layers": layers, "head": head}

    E = (len(cards) + 1) * hidden
    return {
        "dense": lin(num_dense, hidden),
        "emb": [jax.random.normal(next(keys), (c, hidden), jnp.float32) for c in cards],
        "experts": [mlp(E, expert_dims, False) for _ in range(num_experts)],
        "towers": [mlp(expert_dims[-1], tower_dims, True) for _ in range(num_tasks)],
        "gates": [lin(E, num_experts) for _ in range(num_tasks)],
    }


def _fold_bn(lin, bn):
    # y = ((x@w + b) - mean) * gamma/sqrt(var+eps) + beta  ==  x@w' + b'
    scale = bn["gamma"] * jax.lax.rsqrt(bn["var"] + _BN_EPS)
    w = lin["w"] * scale[None, :]
    b = (lin["b"] - bn["mean"]) * scale + bn["beta"]
    return w, b


def _block_diag(mats):
    R = sum(m.shape[0] for m in mats)
    C = sum(m.shape[1] for m in mats)
    out = jnp.zeros((R, C), jnp.float32)
    r = c = 0
    for m in mats:
        out = out.at[r:r + m.shape[0], c:c + m.shape[1]].set(m)
        r += m.shape[0]
        c += m.shape[1]
    return out


def prepare_fused(raw, num_dense, cards, hidden, expert_dims, tower_dims,
                  num_tasks, num_experts):
    """Fold BN + embedding tables into Linears; pack experts/gates/towers/heads."""
    f32, bf16 = jnp.float32, jnp.bfloat16
    NE, NT, F = num_experts, num_tasks, expert_dims[-1]

    def bf(x):
        return x.astype(bf16)

    def row(b):
        return b.astype(f32)[None, :]

    flat = []
    # dense embedding Linear (no BN on this layer in the torch module)
    flat += [bf(raw["dense"]["w"]), row(raw["dense"]["b"])]

    # block-diagonal embedding table: (sum(cards), n_sparse*hidden)
    T_bd = _block_diag(raw["emb"])

    # expert layer 0 (BN folded), all experts concatenated along the output
    # dim; rows split (dense-emb | sparse); embedding table folded into the
    # sparse rows so the in-kernel lookup is a multi-hot matmul.
    ws, bs = [], []
    for ex in raw["experts"]:
        w, b = _fold_bn(ex["layers"][0]["lin"], ex["layers"][0]["bn"])
        ws.append(w); bs.append(b)
    W0 = jnp.concatenate(ws, axis=1)                       # (E, NE*D0)
    flat += [bf(W0[:hidden]), bf(T_bd @ W0[hidden:]), row(jnp.concatenate(bs))]

    # deeper expert layers: block-diagonal
    for li in range(1, len(expert_dims)):
        ws, bs = [], []
        for ex in raw["experts"]:
            w, b = _fold_bn(ex["layers"][li]["lin"], ex["layers"][li]["bn"])
            ws.append(w); bs.append(b)
        flat += [bf(_block_diag(ws)), row(jnp.concatenate(bs))]

    # gates: all tasks in one matmul; sparse rows folded with the tables
    Wg = jnp.concatenate([g["w"] for g in raw["gates"]], axis=1)   # (E, NT*NE)
    bg = jnp.concatenate([g["b"] for g in raw["gates"]])
    flat += [bf(Wg[:hidden]), bf(T_bd @ Wg[hidden:]), row(bg)]

    # 0/1 helper matrices for the MXU-friendly per-task softmax + mixture
    sum_mat = jnp.kron(jnp.eye(NT, dtype=f32), jnp.ones((NE, 1), f32))          # (NT*NE, NT)
    expand_e = jnp.kron(jnp.eye(NT * NE, dtype=f32), jnp.ones((1, F), f32))     # (NT*NE, NT*NE*F)
    expand_t = jnp.kron(jnp.eye(NT, dtype=f32), jnp.ones((1, NE * F), f32))     # (NT, NT*NE*F)
    flat += [sum_mat, expand_e, expand_t]

    # sum-over-experts fold for the first linear after the mixture
    S = jnp.kron(jnp.eye(NT, dtype=f32),
                 jnp.tile(jnp.eye(F, dtype=f32), (NE, 1)))                      # (NT*NE*F, NT*F)

    # towers: block-diagonal per layer (all tasks at once)
    for li in range(len(tower_dims)):
        ws, bs = [], []
        for tw in raw["towers"]:
            w, b = _fold_bn(tw["layers"][li]["lin"], tw["layers"][li]["bn"])
            ws.append(w); bs.append(b)
        W = _block_diag(ws)
        if li == 0:
            W = S @ W
        flat += [bf(W), row(jnp.concatenate(bs))]

    # heads: block-diagonal -> lane-packed (.., NT) output
    Wh = _block_diag([tw["head"]["w"] for tw in raw["towers"]])
    if len(tower_dims) == 0:
        Wh = S @ Wh
    flat += [bf(Wh), row(jnp.concatenate([tw["head"]["b"] for tw in raw["towers"]]))]

    offsets, off = [], 0
    for c in cards:
        offsets.append(off)
        off += c

    cfg = dict(
        n_expert_layers=len(expert_dims),
        n_tower_layers=len(tower_dims),
        num_experts=NE, num_tasks=NT, expert_out_dim=F,
        total_card=off, offsets=tuple(offsets),
    )
    return {"flat_weights": flat, "cfg": cfg}


# ----------------------------- batch tiling -----------------------------------

def _round_up(x, m):
    return (x + m - 1) // m * m


def _batch_tiling(B):
    """Pick (block_b, padded_B).

    block_b is a multiple of 128 (lane-dense transposed output, bf16-friendly
    sublanes) or equals padded_B for tiny batches.  Big batches keep >= 2 grid
    steps so both v7x TensorCores get work; padding waste is bounded.
    """
    if B < 256:
        bb = _round_up(max(B, 8), 16)
        return bb, bb
    bb = 1024        # 512-1024-row tiles hit ~85% of the HBM roofline
    while bb > 128 and (B < 2 * bb or _round_up(B, bb) - B > bb // 2):
        bb //= 2
    return bb, _round_up(B, bb)


# ----------------------------- fused forward pass ----------------------------

def mmoe_forward_fused(fused, dense_features, sparse_features):
    cfg = fused["cfg"]
    NT = cfg["num_tasks"]
    flat = fused["flat_weights"]

    B = dense_features.shape[0]
    block_b, B_pad = _batch_tiling(B)
    grid = (B_pad // block_b,)

    d = dense_features.astype(jnp.bfloat16)
    s = sparse_features.astype(jnp.int32)
    if B_pad != B:
        d = jnp.pad(d, ((0, B_pad - B), (0, 0)))
        s = jnp.pad(s, ((0, B_pad - B), (0, 0)))       # index 0 is a valid row

    def run(out_transposed, weight_mode):
        kernel = _make_fused_kernel(cfg, block_b, out_transposed)

        def wspec(arr):
            if weight_mode is None:
                return pl.BlockSpec(arr.shape, lambda i: (0, 0))
            return pl.BlockSpec(arr.shape, lambda i: (0, 0),
                                pipeline_mode=weight_mode)

        in_specs = [pl.BlockSpec((block_b, d.shape[1]), lambda i: (i, 0)),
                    pl.BlockSpec((block_b, s.shape[1]), lambda i: (i, 0))]
        in_specs += [wspec(a) for a in flat]

        if out_transposed:
            out_shape = jax.ShapeDtypeStruct((NT, B_pad), jnp.float32)
            out_spec = pl.BlockSpec((NT, block_b), lambda i: (0, i))
        else:
            out_shape = jax.ShapeDtypeStruct((B_pad, NT), jnp.float32)
            out_spec = pl.BlockSpec((block_b, NT), lambda i: (i, 0))

        out = pl.pallas_call(
            kernel,
            out_shape=out_shape,
            grid=grid,
            in_specs=in_specs,
            out_specs=out_spec,
            compiler_params=pltpu.CompilerParams(
                dimension_semantics=("parallel",),
                vmem_limit_bytes=48 * 1024 * 1024),
        )(d, s, *flat)
        return out if out_transposed else out.T       # always (NT, B_pad)

    try:
        # optimized path: lane-dense transposed output + single-buffered weights
        outT = run(True, pl.Buffered(1))
    except Exception:
        # conservative fallback for jax versions / lowerings that reject the
        # pipeline_mode hint or the narrow in-kernel transpose.
        outT = run(False, None)

    # list of per-task (B,) results, matching the PyTorch module
    return [outT[t, :B] for t in range(NT)]


# ----------------------------- plain-JAX reference ---------------------------

def reference_forward(raw, dense_features, sparse_features):
    semb = jnp.concatenate(
        [jnp.take(tbl, sparse_features[:, i], axis=0)
         for i, tbl in enumerate(raw["emb"])], axis=1)
    demb = dense_features @ raw["dense"]["w"] + raw["dense"]["b"]
    emb = jnp.concatenate([demb, semb], axis=1)

    def mlp_apply(mlp, x):
        for layer in mlp["layers"]:
            x = x @ layer["lin"]["w"] + layer["lin"]["b"]
            bn = layer["bn"]
            x = (x - bn["mean"]) * jax.lax.rsqrt(bn["var"] + _BN_EPS) * bn["gamma"] + bn["beta"]
            x = jnp.maximum(x, 0.0)
        if mlp["head"] is not None:
            x = x @ mlp["head"]["w"] + mlp["head"]["b"]
        return x

    expert_vals = jnp.stack([mlp_apply(ex, emb) for ex in raw["experts"]], axis=1)
    results = []
    for t, gate in enumerate(raw["gates"]):
        p = jax.nn.softmax(emb @ gate["w"] + gate["b"], axis=1)
        tv = jnp.einsum("be,bef->bf", p, expert_vals)
        y = mlp_apply(raw["towers"][t], tv)
        results.append(jax.nn.sigmoid(y)[:, 0])
    return results


# --------------------------------- main ---------------------------------------

if __name__ == "__main__":
    num_dense = 6
    cards = [10, 20, 30]          # sparse_cardinality
    hidden = 16                   # hidden_dim
    expert_dims = [32, 16]        # expert_mlp_dims
    tower_dims = [8]              # tower_mlp_dims
    num_tasks = 2
    num_experts = 3
    # dropout = 0.2 -> identity at inference

    key = jax.random.PRNGKey(0)
    kp, kd1, ks1, kd2, ks2 = jax.random.split(key, 5)

    raw = init_raw_params(kp, num_dense, cards, hidden, expert_dims, tower_dims,
                          num_tasks, num_experts)
    fused = prepare_fused(raw, num_dense, cards, hidden, expert_dims, tower_dims,
                          num_tasks, num_experts)

    def check(B, kdense, ksparse):
        dense = jax.random.normal(kdense, (B, num_dense), jnp.float32)
        sparse = jnp.stack(
            [jax.random.randint(jax.random.fold_in(ksparse, i), (B,), 0, c)
             for i, c in enumerate(cards)], axis=1).astype(jnp.int32)

        got = jax.block_until_ready(mmoe_forward_fused(fused, dense, sparse))
        want = reference_forward(raw, dense, sparse)

        assert len(got) == num_tasks
        for g, w in zip(got, want):
            assert g.shape == (B,)
            assert bool(jnp.all((g >= 0.0) & (g <= 1.0)))
            # bf16 weight/activation streaming (f32 accumulation) vs f32 reference
            assert bool(jnp.max(jnp.abs(g - w)) < 3e-2), float(jnp.max(jnp.abs(g - w)))

    check(8, kd1, ks1)      # tiny single-tile path
    check(300, kd2, ks2)    # padded, multi-step (3 x 128-row) parallel grid path
    print("KERNEL_OK")
</pallas_src>

<mosaic_0001>
module attributes {stable_mosaic.version = 11 : i64} {
  func.func @kernel(%arg0: i32, %arg1: memref<16x6xbf16, #tpu.memory_space<vmem>>, %arg2: memref<16x3xi32, #tpu.memory_space<vmem>>, %arg3: memref<6x16xbf16, #tpu.memory_space<vmem>>, %arg4: memref<1x16xf32, #tpu.memory_space<vmem>>, %arg5: memref<16x96xbf16, #tpu.memory_space<vmem>>, %arg6: memref<60x96xbf16, #tpu.memory_space<vmem>>, %arg7: memref<1x96xf32, #tpu.memory_space<vmem>>, %arg8: memref<96x48xbf16, #tpu.memory_space<vmem>>, %arg9: memref<1x48xf32, #tpu.memory_space<vmem>>, %arg10: memref<16x6xbf16, #tpu.memory_space<vmem>>, %arg11: memref<60x6xbf16, #tpu.memory_space<vmem>>, %arg12: memref<1x6xf32, #tpu.memory_space<vmem>>, %arg13: memref<6x2xf32, #tpu.memory_space<vmem>>, %arg14: memref<6x96xf32, #tpu.memory_space<vmem>>, %arg15: memref<2x96xf32, #tpu.memory_space<vmem>>, %arg16: memref<96x16xbf16, #tpu.memory_space<vmem>>, %arg17: memref<1x16xf32, #tpu.memory_space<vmem>>, %arg18: memref<16x2xbf16, #tpu.memory_space<vmem>>, %arg19: memref<1x2xf32, #tpu.memory_space<vmem>>, %arg20: memref<2x16xf32, #tpu.memory_space<vmem>>) attributes {dimension_semantics = [#tpu.dimension_semantics<parallel>], iteration_bounds = array<i64: 1>, scalar_prefetch = 0 : i64, scratch_operands = 0 : i64, tpu.core_type = #tpu.core_type<tc>, window_params = [{transform_indices = @transform_0, window_bounds = array<i64: 16, 6>}, {transform_indices = @transform_1, window_bounds = array<i64: 16, 3>}, {pipeline_mode = #tpu.pipeline_mode<synchronous>, transform_indices = @transform_2, window_bounds = array<i64: 6, 16>}, {pipeline_mode = #tpu.pipeline_mode<synchronous>, transform_indices = @transform_3, window_bounds = array<i64: 1, 16>}, {pipeline_mode = #tpu.pipeline_mode<synchronous>, transform_indices = @transform_4, window_bounds = array<i64: 16, 96>}, {pipeline_mode = #tpu.pipeline_mode<synchronous>, transform_indices = @transform_5, window_bounds = array<i64: 60, 96>}, {pipeline_mode = #tpu.pipeline_mode<synchronous>, transform_indices = @transform_6, window_bounds = array<i64: 1, 96>}, {pipeline_mode = #tpu.pipeline_mode<synchronous>, transform_indices = @transform_7, window_bounds = array<i64: 96, 48>}, {pipeline_mode = #tpu.pipeline_mode<synchronous>, transform_indices = @transform_8, window_bounds = array<i64: 1, 48>}, {pipeline_mode = #tpu.pipeline_mode<synchronous>, transform_indices = @transform_9, window_bounds = array<i64: 16, 6>}, {pipeline_mode = #tpu.pipeline_mode<synchronous>, transform_indices = @transform_10, window_bounds = array<i64: 60, 6>}, {pipeline_mode = #tpu.pipeline_mode<synchronous>, transform_indices = @transform_11, window_bounds = array<i64: 1, 6>}, {pipeline_mode = #tpu.pipeline_mode<synchronous>, transform_indices = @transform_12, window_bounds = array<i64: 6, 2>}, {pipeline_mode = #tpu.pipeline_mode<synchronous>, transform_indices = @transform_13, window_bounds = array<i64: 6, 96>}, {pipeline_mode = #tpu.pipeline_mode<synchronous>, transform_indices = @transform_14, window_bounds = array<i64: 2, 96>}, {pipeline_mode = #tpu.pipeline_mode<synchronous>, transform_indices = @transform_15, window_bounds = array<i64: 96, 16>}, {pipeline_mode = #tpu.pipeline_mode<synchronous>, transform_indices = @transform_16, window_bounds = array<i64: 1, 16>}, {pipeline_mode = #tpu.pipeline_mode<synchronous>, transform_indices = @transform_17, window_bounds = array<i64: 16, 2>}, {pipeline_mode = #tpu.pipeline_mode<synchronous>, transform_indices = @transform_18, window_bounds = array<i64: 1, 2>}, {transform_indices = @transform_19, window_bounds = array<i64: 2, 16>}]} {
    %c0 = arith.constant 0 : index
    %c0_0 = arith.constant 0 : index
    %0 = vector.load %arg2[%c0, %c0_0] : memref<16x3xi32, #tpu.memory_space<vmem>>, vector<16x3xi32>
    %1 = tpu.iota {dimensions = array<i32: 1>} : vector<16x60xi32>
    %cst = arith.constant 0.000000e+00 : bf16
    %2 = vector.broadcast %cst : bf16 to vector<16x60xbf16>
    %3 = vector.extract_strided_slice %0 {offsets = [0, 0], sizes = [16, 1], strides = [1, 1]} : vector<16x3xi32> to vector<16x1xi32>
    %c0_i32 = arith.constant 0 : i32
    %4 = vector.broadcast %c0_i32 : i32 to vector<16x1xi32>
    %5 = arith.addi %3, %4 : vector<16x1xi32>
    %6 = vector.broadcast %5 : vector<16x1xi32> to vector<16x60xi32>
    %7 = arith.cmpi eq, %1, %6 : vector<16x60xi32>
    %8 = arith.extui %7 : vector<16x60xi1> to vector<16x60xi32>
    %9 = arith.sitofp %8 : vector<16x60xi32> to vector<16x60xf32>
    %10 = arith.truncf %9 : vector<16x60xf32> to vector<16x60xbf16>
    %11 = arith.addf %2, %10 : vector<16x60xbf16>
    %12 = vector.extract_strided_slice %0 {offsets = [0, 1], sizes = [16, 1], strides = [1, 1]} : vector<16x3xi32> to vector<16x1xi32>
    %c10_i32 = arith.constant 10 : i32
    %13 = vector.broadcast %c10_i32 : i32 to vector<16x1xi32>
    %14 = arith.addi %12, %13 : vector<16x1xi32>
    %15 = vector.broadcast %14 : vector<16x1xi32> to vector<16x60xi32>
    %16 = arith.cmpi eq, %1, %15 : vector<16x60xi32>
    %17 = arith.extui %16 : vector<16x60xi1> to vector<16x60xi32>
    %18 = arith.sitofp %17 : vector<16x60xi32> to vector<16x60xf32>
    %19 = arith.truncf %18 : vector<16x60xf32> to vector<16x60xbf16>
    %20 = arith.addf %11, %19 : vector<16x60xbf16>
    %21 = vector.extract_strided_slice %0 {offsets = [0, 2], sizes = [16, 1], strides = [1, 1]} : vector<16x3xi32> to vector<16x1xi32>
    %c30_i32 = arith.constant 30 : i32
    %22 = vector.broadcast %c30_i32 : i32 to vector<16x1xi32>
    %23 = arith.addi %21, %22 : vector<16x1xi32>
    %24 = vector.broadcast %23 : vector<16x1xi32> to vector<16x60xi32>
    %25 = arith.cmpi eq, %1, %24 : vector<16x60xi32>
    %26 = arith.extui %25 : vector<16x60xi1> to vector<16x60xi32>
    %27 = arith.sitofp %26 : vector<16x60xi32> to vector<16x60xf32>
    %28 = arith.truncf %27 : vector<16x60xf32> to vector<16x60xbf16>
    %29 = arith.addf %20, %28 : vector<16x60xbf16>
    %c0_1 = arith.constant 0 : index
    %c0_2 = arith.constant 0 : index
    %30 = vector.load %arg1[%c0_1, %c0_2] : memref<16x6xbf16, #tpu.memory_space<vmem>>, vector<16x6xbf16>
    %c0_3 = arith.constant 0 : index
    %c0_4 = arith.constant 0 : index
    %31 = vector.load %arg3[%c0_3, %c0_4] : memref<6x16xbf16, #tpu.memory_space<vmem>>, vector<6x16xbf16>
    %cst_5 = arith.constant dense<0.000000e+00> : vector<16x16xf32>
    %32 = tpu.matmul %30, %31, %cst_5 {dimension_numbers = #tpu.dot_dimension_numbers<[1], [0], [0], [1], [0, 0, 1, 1], [], []>} : vector<16x6xbf16>, vector<6x16xbf16>, vector<16x16xf32> -> vector<16x16xf32>
    %c0_6 = arith.constant 0 : index
    %c0_7 = arith.constant 0 : index
    %33 = vector.load %arg4[%c0_6, %c0_7] : memref<1x16xf32, #tpu.memory_space<vmem>>, vector<1x16xf32>
    %34 = vector.broadcast %33 : vector<1x16xf32> to vector<16x16xf32>
    %35 = arith.addf %32, %34 : vector<16x16xf32>
    %36 = arith.truncf %35 : vector<16x16xf32> to vector<16x16xbf16>
    %c0_8 = arith.constant 0 : index
    %c0_9 = arith.constant 0 : index
    %37 = vector.load %arg5[%c0_8, %c0_9] : memref<16x96xbf16, #tpu.memory_space<vmem>>, vector<16x96xbf16>
    %cst_10 = arith.constant dense<0.000000e+00> : vector<16x96xf32>
    %38 = tpu.matmul %36, %37, %cst_10 {dimension_numbers = #tpu.dot_dimension_numbers<[1], [0], [0], [1], [0, 0, 1, 1], [], []>} : vector<16x16xbf16>, vector<16x96xbf16>, vector<16x96xf32> -> vector<16x96xf32>
    %c0_11 = arith.constant 0 : index
    %c0_12 = arith.constant 0 : index
    %39 = vector.load %arg6[%c0_11, %c0_12] : memref<60x96xbf16, #tpu.memory_space<vmem>>, vector<60x96xbf16>
    %cst_13 = arith.constant dense<0.000000e+00> : vector<16x96xf32>
    %40 = tpu.matmul %29, %39, %cst_13 {dimension_numbers = #tpu.dot_dimension_numbers<[1], [0], [0], [1], [0, 0, 1, 1], [], []>} : vector<16x60xbf16>, vector<60x96xbf16>, vector<16x96xf32> -> vector<16x96xf32>
    %41 = arith.addf %38, %40 : vector<16x96xf32>
    %c0_14 = arith.constant 0 : index
    %c0_15 = arith.constant 0 : index
    %42 = vector.load %arg7[%c0_14, %c0_15] : memref<1x96xf32, #tpu.memory_space<vmem>>, vector<1x96xf32>
    %43 = vector.broadcast %42 : vector<1x96xf32> to vector<16x96xf32>
    %44 = arith.addf %41, %43 : vector<16x96xf32>
    %cst_16 = arith.constant 0.000000e+00 : f32
    %45 = vector.broadcast %cst_16 : f32 to vector<16x96xf32>
    %46 = arith.maximumf %44, %45 : vector<16x96xf32>
    %47 = arith.truncf %46 : vector<16x96xf32> to vector<16x96xbf16>
    %c0_17 = arith.constant 0 : index
    %c0_18 = arith.constant 0 : index
    %48 = vector.load %arg8[%c0_17, %c0_18] : memref<96x48xbf16, #tpu.memory_space<vmem>>, vector<96x48xbf16>
    %cst_19 = arith.constant dense<0.000000e+00> : vector<16x48xf32>
    %49 = tpu.matmul %47, %48, %cst_19 {dimension_numbers = #tpu.dot_dimension_numbers<[1], [0], [0], [1], [0, 0, 1, 1], [], []>} : vector<16x96xbf16>, vector<96x48xbf16>, vector<16x48xf32> -> vector<16x48xf32>
    %c0_20 = arith.constant 0 : index
    %c0_21 = arith.constant 0 : index
    %50 = vector.load %arg9[%c0_20, %c0_21] : memref<1x48xf32, #tpu.memory_space<vmem>>, vector<1x48xf32>
    %51 = vector.broadcast %50 : vector<1x48xf32> to vector<16x48xf32>
    %52 = arith.addf %49, %51 : vector<16x48xf32>
    %cst_22 = arith.constant 0.000000e+00 : f32
    %53 = vector.broadcast %cst_22 : f32 to vector<16x48xf32>
    %54 = arith.maximumf %52, %53 : vector<16x48xf32>
    %c0_23 = arith.constant 0 : index
    %c0_24 = arith.constant 0 : index
    %55 = vector.load %arg10[%c0_23, %c0_24] : memref<16x6xbf16, #tpu.memory_space<vmem>>, vector<16x6xbf16>
    %cst_25 = arith.constant dense<0.000000e+00> : vector<16x6xf32>
    %56 = tpu.matmul %36, %55, %cst_25 {dimension_numbers = #tpu.dot_dimension_numbers<[1], [0], [0], [1], [0, 0, 1, 1], [], []>} : vector<16x16xbf16>, vector<16x6xbf16>, vector<16x6xf32> -> vector<16x6xf32>
    %c0_26 = arith.constant 0 : index
    %c0_27 = arith.constant 0 : index
    %57 = vector.load %arg11[%c0_26, %c0_27] : memref<60x6xbf16, #tpu.memory_space<vmem>>, vector<60x6xbf16>
    %cst_28 = arith.constant dense<0.000000e+00> : vector<16x6xf32>
    %58 = tpu.matmul %29, %57, %cst_28 {dimension_numbers = #tpu.dot_dimension_numbers<[1], [0], [0], [1], [0, 0, 1, 1], [], []>} : vector<16x60xbf16>, vector<60x6xbf16>, vector<16x6xf32> -> vector<16x6xf32>
    %59 = arith.addf %56, %58 : vector<16x6xf32>
    %c0_29 = arith.constant 0 : index
    %c0_30 = arith.constant 0 : index
    %60 = vector.load %arg12[%c0_29, %c0_30] : memref<1x6xf32, #tpu.memory_space<vmem>>, vector<1x6xf32>
    %61 = vector.broadcast %60 : vector<1x6xf32> to vector<16x6xf32>
    %62 = arith.addf %59, %61 : vector<16x6xf32>
    %cst_31 = arith.constant dense<0xFF800000> : vector<16xf32>
    %63 = vector.multi_reduction <maximumf>, %62, %cst_31 [1] : vector<16x6xf32> to vector<16xf32>
    %64 = vector.shape_cast %63 : vector<16xf32> to vector<16x1xf32>
    %65 = vector.broadcast %64 : vector<16x1xf32> to vector<16x6xf32>
    %66 = arith.subf %62, %65 : vector<16x6xf32>
    %67 = math.exp %66 : vector<16x6xf32>
    %c0_32 = arith.constant 0 : index
    %c0_33 = arith.constant 0 : index
    %68 = vector.load %arg13[%c0_32, %c0_33] : memref<6x2xf32, #tpu.memory_space<vmem>>, vector<6x2xf32>
    %cst_34 = arith.constant dense<0.000000e+00> : vector<16x2xf32>
    %69 = tpu.matmul %67, %68, %cst_34 {dimension_numbers = #tpu.dot_dimension_numbers<[1], [0], [0], [1], [0, 0, 1, 1], [], []>} : vector<16x6xf32>, vector<6x2xf32>, vector<16x2xf32> -> vector<16x2xf32>
    %cst_35 = arith.constant 1.000000e+00 : f32
    %70 = vector.broadcast %cst_35 : f32 to vector<16x2xf32>
    %71 = arith.divf %70, %69 : vector<16x2xf32>
    %c0_36 = arith.constant 0 : index
    %c0_37 = arith.constant 0 : index
    %72 = vector.load %arg14[%c0_36, %c0_37] : memref<6x96xf32, #tpu.memory_space<vmem>>, vector<6x96xf32>
    %cst_38 = arith.constant dense<0.000000e+00> : vector<16x96xf32>
    %73 = tpu.matmul %67, %72, %cst_38 {dimension_numbers = #tpu.dot_dimension_numbers<[1], [0], [0], [1], [0, 0, 1, 1], [], []>} : vector<16x6xf32>, vector<6x96xf32>, vector<16x96xf32> -> vector<16x96xf32>
    %c0_39 = arith.constant 0 : index
    %c0_40 = arith.constant 0 : index
    %74 = vector.load %arg15[%c0_39, %c0_40] : memref<2x96xf32, #tpu.memory_space<vmem>>, vector<2x96xf32>
    %cst_41 = arith.constant dense<0.000000e+00> : vector<16x96xf32>
    %75 = tpu.matmul %71, %74, %cst_41 {dimension_numbers = #tpu.dot_dimension_numbers<[1], [0], [0], [1], [0, 0, 1, 1], [], []>} : vector<16x2xf32>, vector<2x96xf32>, vector<16x96xf32> -> vector<16x96xf32>
    %76 = arith.mulf %73, %75 : vector<16x96xf32>
    %77 = tpu.concatenate %54, %54 in 1 : vector<16x48xf32>, vector<16x48xf32> -> vector<16x96xf32>
    %78 = arith.mulf %76, %77 : vector<16x96xf32>
    %79 = arith.truncf %78 : vector<16x96xf32> to vector<16x96xbf16>
    %c0_42 = arith.constant 0 : index
    %c0_43 = arith.constant 0 : index
    %80 = vector.load %arg16[%c0_42, %c0_43] : memref<96x16xbf16, #tpu.memory_space<vmem>>, vector<96x16xbf16>
    %cst_44 = arith.constant dense<0.000000e+00> : vector<16x16xf32>
    %81 = tpu.matmul %79, %80, %cst_44 {dimension_numbers = #tpu.dot_dimension_numbers<[1], [0], [0], [1], [0, 0, 1, 1], [], []>} : vector<16x96xbf16>, vector<96x16xbf16>, vector<16x16xf32> -> vector<16x16xf32>
    %c0_45 = arith.constant 0 : index
    %c0_46 = arith.constant 0 : index
    %82 = vector.load %arg17[%c0_45, %c0_46] : memref<1x16xf32, #tpu.memory_space<vmem>>, vector<1x16xf32>
    %83 = vector.broadcast %82 : vector<1x16xf32> to vector<16x16xf32>
    %84 = arith.addf %81, %83 : vector<16x16xf32>
    %cst_47 = arith.constant 0.000000e+00 : f32
    %85 = vector.broadcast %cst_47 : f32 to vector<16x16xf32>
    %86 = arith.maximumf %84, %85 : vector<16x16xf32>
    %87 = arith.truncf %86 : vector<16x16xf32> to vector<16x16xbf16>
    %c0_48 = arith.constant 0 : index
    %c0_49 = arith.constant 0 : index
    %88 = vector.load %arg18[%c0_48, %c0_49] : memref<16x2xbf16, #tpu.memory_space<vmem>>, vector<16x2xbf16>
    %cst_50 = arith.constant dense<0.000000e+00> : vector<16x2xf32>
    %89 = tpu.matmul %87, %88, %cst_50 {dimension_numbers = #tpu.dot_dimension_numbers<[1], [0], [0], [1], [0, 0, 1, 1], [], []>} : vector<16x16xbf16>, vector<16x2xbf16>, vector<16x2xf32> -> vector<16x2xf32>
    %c0_51 = arith.constant 0 : index
    %c0_52 = arith.constant 0 : index
    %90 = vector.load %arg19[%c0_51, %c0_52] : memref<1x2xf32, #tpu.memory_space<vmem>>, vector<1x2xf32>
    %91 = vector.broadcast %90 : vector<1x2xf32> to vector<16x2xf32>
    %92 = arith.addf %89, %91 : vector<16x2xf32>
    %93 = arith.negf %92 : vector<16x2xf32>
    %94 = math.exp %93 : vector<16x2xf32>
    %cst_53 = arith.constant 1.000000e+00 : f32
    %95 = vector.broadcast %cst_53 : f32 to vector<16x2xf32>
    %96 = arith.addf %95, %94 : vector<16x2xf32>
    %97 = arith.divf %95, %96 : vector<16x2xf32>
    %98 = tpu.transpose %97, [1, 0] : vector<16x2xf32> -> vector<2x16xf32>
    %c0_54 = arith.constant 0 : index
    %c0_55 = arith.constant 0 : index
    %99 = vector.load %arg20[%c0_54, %c0_55] : memref<2x16xf32, #tpu.memory_space<vmem>>, vector<2x16xf32>
    tpu.vector_store %arg20[%c0_54, %c0_55], %98 {strides = array<i32>} : memref<2x16xf32, #tpu.memory_space<vmem>>, vector<2x16xf32>,
    return
  }
  func.func @transform_0(%arg0: i32) -> (i32, i32) {
    %c0_i32 = arith.constant 0 : i32
    %c0_i32_0 = arith.constant 0 : i32
    return %arg0, %c0_i32 : i32, i32
  }
  func.func @transform_1(%arg0: i32) -> (i32, i32) {
    %c0_i32 = arith.constant 0 : i32
    %c0_i32_0 = arith.constant 0 : i32
    return %arg0, %c0_i32 : i32, i32
  }
  func.func @transform_2(%arg0: i32) -> (i32, i32) {
    %c0_i32 = arith.constant 0 : i32
    %c0_i32_0 = arith.constant 0 : i32
    %c0_i32_1 = arith.constant 0 : i32
    return %c0_i32, %c0_i32_0 : i32, i32
  }
  func.func @transform_3(%arg0: i32) -> (i32, i32) {
    %c0_i32 = arith.constant 0 : i32
    %c0_i32_0 = arith.constant 0 : i32
    %c0_i32_1 = arith.constant 0 : i32
    return %c0_i32, %c0_i32_0 : i32, i32
  }
  func.func @transform_4(%arg0: i32) -> (i32, i32) {
    %c0_i32 = arith.constant 0 : i32
    %c0_i32_0 = arith.constant 0 : i32
    %c0_i32_1 = arith.constant 0 : i32
    return %c0_i32, %c0_i32_0 : i32, i32
  }
  func.func @transform_5(%arg0: i32) -> (i32, i32) {
    %c0_i32 = arith.constant 0 : i32
    %c0_i32_0 = arith.constant 0 : i32
    %c0_i32_1 = arith.constant 0 : i32
    return %c0_i32, %c0_i32_0 : i32, i32
  }
  func.func @transform_6(%arg0: i32) -> (i32, i32) {
    %c0_i32 = arith.constant 0 : i32
    %c0_i32_0 = arith.constant 0 : i32
    %c0_i32_1 = arith.constant 0 : i32
    return %c0_i32, %c0_i32_0 : i32, i32
  }
  func.func @transform_7(%arg0: i32) -> (i32, i32) {
    %c0_i32 = arith.constant 0 : i32
    %c0_i32_0 = arith.constant 0 : i32
    %c0_i32_1 = arith.constant 0 : i32
    return %c0_i32, %c0_i32_0 : i32, i32
  }
  func.func @transform_8(%arg0: i32) -> (i32, i32) {
    %c0_i32 = arith.constant 0 : i32
    %c0_i32_0 = arith.constant 0 : i32
    %c0_i32_1 = arith.constant 0 : i32
    return %c0_i32, %c0_i32_0 : i32, i32
  }
  func.func @transform_9(%arg0: i32) -> (i32, i32) {
    %c0_i32 = arith.constant 0 : i32
    %c0_i32_0 = arith.constant 0 : i32
    %c0_i32_1 = arith.constant 0 : i32
    return %c0_i32, %c0_i32_0 : i32, i32
  }
  func.func @transform_10(%arg0: i32) -> (i32, i32) {
    %c0_i32 = arith.constant 0 : i32
    %c0_i32_0 = arith.constant 0 : i32
    %c0_i32_1 = arith.constant 0 : i32
    return %c0_i32, %c0_i32_0 : i32, i32
  }
  func.func @transform_11(%arg0: i32) -> (i32, i32) {
    %c0_i32 = arith.constant 0 : i32
    %c0_i32_0 = arith.constant 0 : i32
    %c0_i32_1 = arith.constant 0 : i32
    return %c0_i32, %c0_i32_0 : i32, i32
  }
  func.func @transform_12(%arg0: i32) -> (i32, i32) {
    %c0_i32 = arith.constant 0 : i32
    %c0_i32_0 = arith.constant 0 : i32
    %c0_i32_1 = arith.constant 0 : i32
    return %c0_i32, %c0_i32_0 : i32, i32
  }
  func.func @transform_13(%arg0: i32) -> (i32, i32) {
    %c0_i32 = arith.constant 0 : i32
    %c0_i32_0 = arith.constant 0 : i32
    %c0_i32_1 = arith.constant 0 : i32
    return %c0_i32, %c0_i32_0 : i32, i32
  }
  func.func @transform_14(%arg0: i32) -> (i32, i32) {
    %c0_i32 = arith.constant 0 : i32
    %c0_i32_0 = arith.constant 0 : i32
    %c0_i32_1 = arith.constant 0 : i32
    return %c0_i32, %c0_i32_0 : i32, i32
  }
  func.func @transform_15(%arg0: i32) -> (i32, i32) {
    %c0_i32 = arith.constant 0 : i32
    %c0_i32_0 = arith.constant 0 : i32
    %c0_i32_1 = arith.constant 0 : i32
    return %c0_i32, %c0_i32_0 : i32, i32
  }
  func.func @transform_16(%arg0: i32) -> (i32, i32) {
    %c0_i32 = arith.constant 0 : i32
    %c0_i32_0 = arith.constant 0 : i32
    %c0_i32_1 = arith.constant 0 : i32
    return %c0_i32, %c0_i32_0 : i32, i32
  }
  func.func @transform_17(%arg0: i32) -> (i32, i32) {
    %c0_i32 = arith.constant 0 : i32
    %c0_i32_0 = arith.constant 0 : i32
    %c0_i32_1 = arith.constant 0 : i32
    return %c0_i32, %c0_i32_0 : i32, i32
  }
  func.func @transform_18(%arg0: i32) -> (i32, i32) {
    %c0_i32 = arith.constant 0 : i32
    %c0_i32_0 = arith.constant 0 : i32
    %c0_i32_1 = arith.constant 0 : i32
    return %c0_i32, %c0_i32_0 : i32, i32
  }
  func.func @transform_19(%arg0: i32) -> (i32, i32) {
    %c0_i32 = arith.constant 0 : i32
    %c0_i32_0 = arith.constant 0 : i32
    return %c0_i32, %arg0 : i32, i32
  }
}

module attributes {stable_mosaic.version = 11 : i64} {
  func.func @kernel(%arg0: i32, %arg1: memref<16x6xbf16, #tpu.memory_space<vmem>>, %arg2: memref<16x3xi32, #tpu.memory_space<vmem>>, %arg3: memref<6x16xbf16, #tpu.memory_space<vmem>>, %arg4: memref<1x16xf32, #tpu.memory_space<vmem>>, %arg5: memref<16x96xbf16, #tpu.memory_space<vmem>>, %arg6: memref<60x96xbf16, #tpu.memory_space<vmem>>, %arg7: memref<1x96xf32, #tpu.memory_space<vmem>>, %arg8: memref<96x48xbf16, #tpu.memory_space<vmem>>, %arg9: memref<1x48xf32, #tpu.memory_space<vmem>>, %arg10: memref<16x6xbf16, #tpu.memory_space<vmem>>, %arg11: memref<60x6xbf16, #tpu.memory_space<vmem>>, %arg12: memref<1x6xf32, #tpu.memory_space<vmem>>, %arg13: memref<6x2xf32, #tpu.memory_space<vmem>>, %arg14: memref<6x96xf32, #tpu.memory_space<vmem>>, %arg15: memref<2x96xf32, #tpu.memory_space<vmem>>, %arg16: memref<96x16xbf16, #tpu.memory_space<vmem>>, %arg17: memref<1x16xf32, #tpu.memory_space<vmem>>, %arg18: memref<16x2xbf16, #tpu.memory_space<vmem>>, %arg19: memref<1x2xf32, #tpu.memory_space<vmem>>, %arg20: memref<16x2xf32, #tpu.memory_space<vmem>>) attributes {dimension_semantics = [#tpu.dimension_semantics<parallel>], iteration_bounds = array<i64: 1>, scalar_prefetch = 0 : i64, scratch_operands = 0 : i64, tpu.core_type = #tpu.core_type<tc>, window_params = [{transform_indices = @transform_0, window_bounds = array<i64: 16, 6>}, {transform_indices = @transform_1, window_bounds = array<i64: 16, 3>}, {pipeline_mode = #tpu.pipeline_mode<synchronous>, transform_indices = @transform_2, window_bounds = array<i64: 6, 16>}, {pipeline_mode = #tpu.pipeline_mode<synchronous>, transform_indices = @transform_3, window_bounds = array<i64: 1, 16>}, {pipeline_mode = #tpu.pipeline_mode<synchronous>, transform_indices = @transform_4, window_bounds = array<i64: 16, 96>}, {pipeline_mode = #tpu.pipeline_mode<synchronous>, transform_indices = @transform_5, window_bounds = array<i64: 60, 96>}, {pipeline_mode = #tpu.pipeline_mode<synchronous>, transform_indices = @transform_6, window_bounds = array<i64: 1, 96>}, {pipeline_mode = #tpu.pipeline_mode<synchronous>, transform_indices = @transform_7, window_bounds = array<i64: 96, 48>}, {pipeline_mode = #tpu.pipeline_mode<synchronous>, transform_indices = @transform_8, window_bounds = array<i64: 1, 48>}, {pipeline_mode = #tpu.pipeline_mode<synchronous>, transform_indices = @transform_9, window_bounds = array<i64: 16, 6>}, {pipeline_mode = #tpu.pipeline_mode<synchronous>, transform_indices = @transform_10, window_bounds = array<i64: 60, 6>}, {pipeline_mode = #tpu.pipeline_mode<synchronous>, transform_indices = @transform_11, window_bounds = array<i64: 1, 6>}, {pipeline_mode = #tpu.pipeline_mode<synchronous>, transform_indices = @transform_12, window_bounds = array<i64: 6, 2>}, {pipeline_mode = #tpu.pipeline_mode<synchronous>, transform_indices = @transform_13, window_bounds = array<i64: 6, 96>}, {pipeline_mode = #tpu.pipeline_mode<synchronous>, transform_indices = @transform_14, window_bounds = array<i64: 2, 96>}, {pipeline_mode = #tpu.pipeline_mode<synchronous>, transform_indices = @transform_15, window_bounds = array<i64: 96, 16>}, {pipeline_mode = #tpu.pipeline_mode<synchronous>, transform_indices = @transform_16, window_bounds = array<i64: 1, 16>}, {pipeline_mode = #tpu.pipeline_mode<synchronous>, transform_indices = @transform_17, window_bounds = array<i64: 16, 2>}, {pipeline_mode = #tpu.pipeline_mode<synchronous>, transform_indices = @transform_18, window_bounds = array<i64: 1, 2>}, {transform_indices = @transform_19, window_bounds = array<i64: 16, 2>}]} {
    %c0 = arith.constant 0 : index
    %c0_0 = arith.constant 0 : index
    %0 = vector.load %arg2[%c0, %c0_0] : memref<16x3xi32, #tpu.memory_space<vmem>>, vector<16x3xi32>
    %1 = tpu.iota {dimensions = array<i32: 1>} : vector<16x60xi32>
    %cst = arith.constant 0.000000e+00 : bf16
    %2 = vector.broadcast %cst : bf16 to vector<16x60xbf16>
    %3 = vector.extract_strided_slice %0 {offsets = [0, 0], sizes = [16, 1], strides = [1, 1]} : vector<16x3xi32> to vector<16x1xi32>
    %c0_i32 = arith.constant 0 : i32
    %4 = vector.broadcast %c0_i32 : i32 to vector<16x1xi32>
    %5 = arith.addi %3, %4 : vector<16x1xi32>
    %6 = vector.broadcast %5 : vector<16x1xi32> to vector<16x60xi32>
    %7 = arith.cmpi eq, %1, %6 : vector<16x60xi32>
    %8 = arith.extui %7 : vector<16x60xi1> to vector<16x60xi32>
    %9 = arith.sitofp %8 : vector<16x60xi32> to vector<16x60xf32>
    %10 = arith.truncf %9 : vector<16x60xf32> to vector<16x60xbf16>
    %11 = arith.addf %2, %10 : vector<16x60xbf16>
    %12 = vector.extract_strided_slice %0 {offsets = [0, 1], sizes = [16, 1], strides = [1, 1]} : vector<16x3xi32> to vector<16x1xi32>
    %c10_i32 = arith.constant 10 : i32
    %13 = vector.broadcast %c10_i32 : i32 to vector<16x1xi32>
    %14 = arith.addi %12, %13 : vector<16x1xi32>
    %15 = vector.broadcast %14 : vector<16x1xi32> to vector<16x60xi32>
    %16 = arith.cmpi eq, %1, %15 : vector<16x60xi32>
    %17 = arith.extui %16 : vector<16x60xi1> to vector<16x60xi32>
    %18 = arith.sitofp %17 : vector<16x60xi32> to vector<16x60xf32>
    %19 = arith.truncf %18 : vector<16x60xf32> to vector<16x60xbf16>
    %20 = arith.addf %11, %19 : vector<16x60xbf16>
    %21 = vector.extract_strided_slice %0 {offsets = [0, 2], sizes = [16, 1], strides = [1, 1]} : vector<16x3xi32> to vector<16x1xi32>
    %c30_i32 = arith.constant 30 : i32
    %22 = vector.broadcast %c30_i32 : i32 to vector<16x1xi32>
    %23 = arith.addi %21, %22 : vector<16x1xi32>
    %24 = vector.broadcast %23 : vector<16x1xi32> to vector<16x60xi32>
    %25 = arith.cmpi eq, %1, %24 : vector<16x60xi32>
    %26 = arith.extui %25 : vector<16x60xi1> to vector<16x60xi32>
    %27 = arith.sitofp %26 : vector<16x60xi32> to vector<16x60xf32>
    %28 = arith.truncf %27 : vector<16x60xf32> to vector<16x60xbf16>
    %29 = arith.addf %20, %28 : vector<16x60xbf16>
    %c0_1 = arith.constant 0 : index
    %c0_2 = arith.constant 0 : index
    %30 = vector.load %arg1[%c0_1, %c0_2] : memref<16x6xbf16, #tpu.memory_space<vmem>>, vector<16x6xbf16>
    %c0_3 = arith.constant 0 : index
    %c0_4 = arith.constant 0 : index
    %31 = vector.load %arg3[%c0_3, %c0_4] : memref<6x16xbf16, #tpu.memory_space<vmem>>, vector<6x16xbf16>
    %cst_5 = arith.constant dense<0.000000e+00> : vector<16x16xf32>
    %32 = tpu.matmul %30, %31, %cst_5 {dimension_numbers = #tpu.dot_dimension_numbers<[1], [0], [0], [1], [0, 0, 1, 1], [], []>} : vector<16x6xbf16>, vector<6x16xbf16>, vector<16x16xf32> -> vector<16x16xf32>
    %c0_6 = arith.constant 0 : index
    %c0_7 = arith.constant 0 : index
    %33 = vector.load %arg4[%c0_6, %c0_7] : memref<1x16xf32, #tpu.memory_space<vmem>>, vector<1x16xf32>
    %34 = vector.broadcast %33 : vector<1x16xf32> to vector<16x16xf32>
    %35 = arith.addf %32, %34 : vector<16x16xf32>
    %36 = arith.truncf %35 : vector<16x16xf32> to vector<16x16xbf16>
    %c0_8 = arith.constant 0 : index
    %c0_9 = arith.constant 0 : index
    %37 = vector.load %arg5[%c0_8, %c0_9] : memref<16x96xbf16, #tpu.memory_space<vmem>>, vector<16x96xbf16>
    %cst_10 = arith.constant dense<0.000000e+00> : vector<16x96xf32>
    %38 = tpu.matmul %36, %37, %cst_10 {dimension_numbers = #tpu.dot_dimension_numbers<[1], [0], [0], [1], [0, 0, 1, 1], [], []>} : vector<16x16xbf16>, vector<16x96xbf16>, vector<16x96xf32> -> vector<16x96xf32>
    %c0_11 = arith.constant 0 : index
    %c0_12 = arith.constant 0 : index
    %39 = vector.load %arg6[%c0_11, %c0_12] : memref<60x96xbf16, #tpu.memory_space<vmem>>, vector<60x96xbf16>
    %cst_13 = arith.constant dense<0.000000e+00> : vector<16x96xf32>
    %40 = tpu.matmul %29, %39, %cst_13 {dimension_numbers = #tpu.dot_dimension_numbers<[1], [0], [0], [1], [0, 0, 1, 1], [], []>} : vector<16x60xbf16>, vector<60x96xbf16>, vector<16x96xf32> -> vector<16x96xf32>
    %41 = arith.addf %38, %40 : vector<16x96xf32>
    %c0_14 = arith.constant 0 : index
    %c0_15 = arith.constant 0 : index
    %42 = vector.load %arg7[%c0_14, %c0_15] : memref<1x96xf32, #tpu.memory_space<vmem>>, vector<1x96xf32>
    %43 = vector.broadcast %42 : vector<1x96xf32> to vector<16x96xf32>
    %44 = arith.addf %41, %43 : vector<16x96xf32>
    %cst_16 = arith.constant 0.000000e+00 : f32
    %45 = vector.broadcast %cst_16 : f32 to vector<16x96xf32>
    %46 = arith.maximumf %44, %45 : vector<16x96xf32>
    %47 = arith.truncf %46 : vector<16x96xf32> to vector<16x96xbf16>
    %c0_17 = arith.constant 0 : index
    %c0_18 = arith.constant 0 : index
    %48 = vector.load %arg8[%c0_17, %c0_18] : memref<96x48xbf16, #tpu.memory_space<vmem>>, vector<96x48xbf16>
    %cst_19 = arith.constant dense<0.000000e+00> : vector<16x48xf32>
    %49 = tpu.matmul %47, %48, %cst_19 {dimension_numbers = #tpu.dot_dimension_numbers<[1], [0], [0], [1], [0, 0, 1, 1], [], []>} : vector<16x96xbf16>, vector<96x48xbf16>, vector<16x48xf32> -> vector<16x48xf32>
    %c0_20 = arith.constant 0 : index
    %c0_21 = arith.constant 0 : index
    %50 = vector.load %arg9[%c0_20, %c0_21] : memref<1x48xf32, #tpu.memory_space<vmem>>, vector<1x48xf32>
    %51 = vector.broadcast %50 : vector<1x48xf32> to vector<16x48xf32>
    %52 = arith.addf %49, %51 : vector<16x48xf32>
    %cst_22 = arith.constant 0.000000e+00 : f32
    %53 = vector.broadcast %cst_22 : f32 to vector<16x48xf32>
    %54 = arith.maximumf %52, %53 : vector<16x48xf32>
    %c0_23 = arith.constant 0 : index
    %c0_24 = arith.constant 0 : index
    %55 = vector.load %arg10[%c0_23, %c0_24] : memref<16x6xbf16, #tpu.memory_space<vmem>>, vector<16x6xbf16>
    %cst_25 = arith.constant dense<0.000000e+00> : vector<16x6xf32>
    %56 = tpu.matmul %36, %55, %cst_25 {dimension_numbers = #tpu.dot_dimension_numbers<[1], [0], [0], [1], [0, 0, 1, 1], [], []>} : vector<16x16xbf16>, vector<16x6xbf16>, vector<16x6xf32> -> vector<16x6xf32>
    %c0_26 = arith.constant 0 : index
    %c0_27 = arith.constant 0 : index
    %57 = vector.load %arg11[%c0_26, %c0_27] : memref<60x6xbf16, #tpu.memory_space<vmem>>, vector<60x6xbf16>
    %cst_28 = arith.constant dense<0.000000e+00> : vector<16x6xf32>
    %58 = tpu.matmul %29, %57, %cst_28 {dimension_numbers = #tpu.dot_dimension_numbers<[1], [0], [0], [1], [0, 0, 1, 1], [], []>} : vector<16x60xbf16>, vector<60x6xbf16>, vector<16x6xf32> -> vector<16x6xf32>
    %59 = arith.addf %56, %58 : vector<16x6xf32>
    %c0_29 = arith.constant 0 : index
    %c0_30 = arith.constant 0 : index
    %60 = vector.load %arg12[%c0_29, %c0_30] : memref<1x6xf32, #tpu.memory_space<vmem>>, vector<1x6xf32>
    %61 = vector.broadcast %60 : vector<1x6xf32> to vector<16x6xf32>
    %62 = arith.addf %59, %61 : vector<16x6xf32>
    %cst_31 = arith.constant dense<0xFF800000> : vector<16xf32>
    %63 = vector.multi_reduction <maximumf>, %62, %cst_31 [1] : vector<16x6xf32> to vector<16xf32>
    %64 = vector.shape_cast %63 : vector<16xf32> to vector<16x1xf32>
    %65 = vector.broadcast %64 : vector<16x1xf32> to vector<16x6xf32>
    %66 = arith.subf %62, %65 : vector<16x6xf32>
    %67 = math.exp %66 : vector<16x6xf32>
    %c0_32 = arith.constant 0 : index
    %c0_33 = arith.constant 0 : index
    %68 = vector.load %arg13[%c0_32, %c0_33] : memref<6x2xf32, #tpu.memory_space<vmem>>, vector<6x2xf32>
    %cst_34 = arith.constant dense<0.000000e+00> : vector<16x2xf32>
    %69 = tpu.matmul %67, %68, %cst_34 {dimension_numbers = #tpu.dot_dimension_numbers<[1], [0], [0], [1], [0, 0, 1, 1], [], []>} : vector<16x6xf32>, vector<6x2xf32>, vector<16x2xf32> -> vector<16x2xf32>
    %cst_35 = arith.constant 1.000000e+00 : f32
    %70 = vector.broadcast %cst_35 : f32 to vector<16x2xf32>
    %71 = arith.divf %70, %69 : vector<16x2xf32>
    %c0_36 = arith.constant 0 : index
    %c0_37 = arith.constant 0 : index
    %72 = vector.load %arg14[%c0_36, %c0_37] : memref<6x96xf32, #tpu.memory_space<vmem>>, vector<6x96xf32>
    %cst_38 = arith.constant dense<0.000000e+00> : vector<16x96xf32>
    %73 = tpu.matmul %67, %72, %cst_38 {dimension_numbers = #tpu.dot_dimension_numbers<[1], [0], [0], [1], [0, 0, 1, 1], [], []>} : vector<16x6xf32>, vector<6x96xf32>, vector<16x96xf32> -> vector<16x96xf32>
    %c0_39 = arith.constant 0 : index
    %c0_40 = arith.constant 0 : index
    %74 = vector.load %arg15[%c0_39, %c0_40] : memref<2x96xf32, #tpu.memory_space<vmem>>, vector<2x96xf32>
    %cst_41 = arith.constant dense<0.000000e+00> : vector<16x96xf32>
    %75 = tpu.matmul %71, %74, %cst_41 {dimension_numbers = #tpu.dot_dimension_numbers<[1], [0], [0], [1], [0, 0, 1, 1], [], []>} : vector<16x2xf32>, vector<2x96xf32>, vector<16x96xf32> -> vector<16x96xf32>
    %76 = arith.mulf %73, %75 : vector<16x96xf32>
    %77 = tpu.concatenate %54, %54 in 1 : vector<16x48xf32>, vector<16x48xf32> -> vector<16x96xf32>
    %78 = arith.mulf %76, %77 : vector<16x96xf32>
    %79 = arith.truncf %78 : vector<16x96xf32> to vector<16x96xbf16>
    %c0_42 = arith.constant 0 : index
    %c0_43 = arith.constant 0 : index
    %80 = vector.load %arg16[%c0_42, %c0_43] : memref<96x16xbf16, #tpu.memory_space<vmem>>, vector<96x16xbf16>
    %cst_44 = arith.constant dense<0.000000e+00> : vector<16x16xf32>
    %81 = tpu.matmul %79, %80, %cst_44 {dimension_numbers = #tpu.dot_dimension_numbers<[1], [0], [0], [1], [0, 0, 1, 1], [], []>} : vector<16x96xbf16>, vector<96x16xbf16>, vector<16x16xf32> -> vector<16x16xf32>
    %c0_45 = arith.constant 0 : index
    %c0_46 = arith.constant 0 : index
    %82 = vector.load %arg17[%c0_45, %c0_46] : memref<1x16xf32, #tpu.memory_space<vmem>>, vector<1x16xf32>
    %83 = vector.broadcast %82 : vector<1x16xf32> to vector<16x16xf32>
    %84 = arith.addf %81, %83 : vector<16x16xf32>
    %cst_47 = arith.constant 0.000000e+00 : f32
    %85 = vector.broadcast %cst_47 : f32 to vector<16x16xf32>
    %86 = arith.maximumf %84, %85 : vector<16x16xf32>
    %87 = arith.truncf %86 : vector<16x16xf32> to vector<16x16xbf16>
    %c0_48 = arith.constant 0 : index
    %c0_49 = arith.constant 0 : index
    %88 = vector.load %arg18[%c0_48, %c0_49] : memref<16x2xbf16, #tpu.memory_space<vmem>>, vector<16x2xbf16>
    %cst_50 = arith.constant dense<0.000000e+00> : vector<16x2xf32>
    %89 = tpu.matmul %87, %88, %cst_50 {dimension_numbers = #tpu.dot_dimension_numbers<[1], [0], [0], [1], [0, 0, 1, 1], [], []>} : vector<16x16xbf16>, vector<16x2xbf16>, vector<16x2xf32> -> vector<16x2xf32>
    %c0_51 = arith.constant 0 : index
    %c0_52 = arith.constant 0 : index
    %90 = vector.load %arg19[%c0_51, %c0_52] : memref<1x2xf32, #tpu.memory_space<vmem>>, vector<1x2xf32>
    %91 = vector.broadcast %90 : vector<1x2xf32> to vector<16x2xf32>
    %92 = arith.addf %89, %91 : vector<16x2xf32>
    %93 = arith.negf %92 : vector<16x2xf32>
    %94 = math.exp %93 : vector<16x2xf32>
    %cst_53 = arith.constant 1.000000e+00 : f32
    %95 = vector.broadcast %cst_53 : f32 to vector<16x2xf32>
    %96 = arith.addf %95, %94 : vector<16x2xf32>
    %97 = arith.divf %95, %96 : vector<16x2xf32>
    %c0_54 = arith.constant 0 : index
    %c0_55 = arith.constant 0 : index
    %98 = vector.load %arg20[%c0_54, %c0_55] : memref<16x2xf32, #tpu.memory_space<vmem>>, vector<16x2xf32>
    tpu.vector_store %arg20[%c0_54, %c0_55], %97 {strides = array<i32>} : memref<16x2xf32, #tpu.memory_space<vmem>>, vector<16x2xf32>,
    return
  }
  func.func @transform_0(%arg0: i32) -> (i32, i32) {
    %c0_i32 = arith.constant 0 : i32
    %c0_i32_0 = arith.constant 0 : i32
    return %arg0, %c0_i32 : i32, i32
  }
  func.func @transform_1(%arg0: i32) -> (i32, i32) {
    %c0_i32 = arith.constant 0 : i32
    %c0_i32_0 = arith.constant 0 : i32
    return %arg0, %c0_i32 : i32, i32
  }
  func.func @transform_2(%arg0: i32) -> (i32, i32) {
    %c0_i32 = arith.constant 0 : i32
    %c0_i32_0 = arith.constant 0 : i32
    %c0_i32_1 = arith.constant 0 : i32
    return %c0_i32, %c0_i32_0 : i32, i32
  }
  func.func @transform_3(%arg0: i32) -> (i32, i32) {
    %c0_i32 = arith.constant 0 : i32
    %c0_i32_0 = arith.constant 0 : i32
    %c0_i32_1 = arith.constant 0 : i32
    return %c0_i32, %c0_i32_0 : i32, i32
  }
  func.func @transform_4(%arg0: i32) -> (i32, i32) {
    %c0_i32 = arith.constant 0 : i32
    %c0_i32_0 = arith.constant 0 : i32
    %c0_i32_1 = arith.constant 0 : i32
    return %c0_i32, %c0_i32_0 : i32, i32
  }
  func.func @transform_5(%arg0: i32) -> (i32, i32) {
    %c0_i32 = arith.constant 0 : i32
    %c0_i32_0 = arith.constant 0 : i32
    %c0_i32_1 = arith.constant 0 : i32
    return %c0_i32, %c0_i32_0 : i32, i32
  }
  func.func @transform_6(%arg0: i32) -> (i32, i32) {
    %c0_i32 = arith.constant 0 : i32
    %c0_i32_0 = arith.constant 0 : i32
    %c0_i32_1 = arith.constant 0 : i32
    return %c0_i32, %c0_i32_0 : i32, i32
  }
  func.func @transform_7(%arg0: i32) -> (i32, i32) {
    %c0_i32 = arith.constant 0 : i32
    %c0_i32_0 = arith.constant 0 : i32
    %c0_i32_1 = arith.constant 0 : i32
    return %c0_i32, %c0_i32_0 : i32, i32
  }
  func.func @transform_8(%arg0: i32) -> (i32, i32) {
    %c0_i32 = arith.constant 0 : i32
    %c0_i32_0 = arith.constant 0 : i32
    %c0_i32_1 = arith.constant 0 : i32
    return %c0_i32, %c0_i32_0 : i32, i32
  }
  func.func @transform_9(%arg0: i32) -> (i32, i32) {
    %c0_i32 = arith.constant 0 : i32
    %c0_i32_0 = arith.constant 0 : i32
    %c0_i32_1 = arith.constant 0 : i32
    return %c0_i32, %c0_i32_0 : i32, i32
  }
  func.func @transform_10(%arg0: i32) -> (i32, i32) {
    %c0_i32 = arith.constant 0 : i32
    %c0_i32_0 = arith.constant 0 : i32
    %c0_i32_1 = arith.constant 0 : i32
    return %c0_i32, %c0_i32_0 : i32, i32
  }
  func.func @transform_11(%arg0: i32) -> (i32, i32) {
    %c0_i32 = arith.constant 0 : i32
    %c0_i32_0 = arith.constant 0 : i32
    %c0_i32_1 = arith.constant 0 : i32
    return %c0_i32, %c0_i32_0 : i32, i32
  }
  func.func @transform_12(%arg0: i32) -> (i32, i32) {
    %c0_i32 = arith.constant 0 : i32
    %c0_i32_0 = arith.constant 0 : i32
    %c0_i32_1 = arith.constant 0 : i32
    return %c0_i32, %c0_i32_0 : i32, i32
  }
  func.func @transform_13(%arg0: i32) -> (i32, i32) {
    %c0_i32 = arith.constant 0 : i32
    %c0_i32_0 = arith.constant 0 : i32
    %c0_i32_1 = arith.constant 0 : i32
    return %c0_i32, %c0_i32_0 : i32, i32
  }
  func.func @transform_14(%arg0: i32) -> (i32, i32) {
    %c0_i32 = arith.constant 0 : i32
    %c0_i32_0 = arith.constant 0 : i32
    %c0_i32_1 = arith.constant 0 : i32
    return %c0_i32, %c0_i32_0 : i32, i32
  }
  func.func @transform_15(%arg0: i32) -> (i32, i32) {
    %c0_i32 = arith.constant 0 : i32
    %c0_i32_0 = arith.constant 0 : i32
    %c0_i32_1 = arith.constant 0 : i32
    return %c0_i32, %c0_i32_0 : i32, i32
  }
  func.func @transform_16(%arg0: i32) -> (i32, i32) {
    %c0_i32 = arith.constant 0 : i32
    %c0_i32_0 = arith.constant 0 : i32
    %c0_i32_1 = arith.constant 0 : i32
    return %c0_i32, %c0_i32_0 : i32, i32
  }
  func.func @transform_17(%arg0: i32) -> (i32, i32) {
    %c0_i32 = arith.constant 0 : i32
    %c0_i32_0 = arith.constant 0 : i32
    %c0_i32_1 = arith.constant 0 : i32
    return %c0_i32, %c0_i32_0 : i32, i32
  }
  func.func @transform_18(%arg0: i32) -> (i32, i32) {
    %c0_i32 = arith.constant 0 : i32
    %c0_i32_0 = arith.constant 0 : i32
    %c0_i32_1 = arith.constant 0 : i32
    return %c0_i32, %c0_i32_0 : i32, i32
  }
  func.func @transform_19(%arg0: i32) -> (i32, i32) {
    %c0_i32 = arith.constant 0 : i32
    %c0_i32_0 = arith.constant 0 : i32
    return %arg0, %c0_i32 : i32, i32
  }
}

</mosaic_0001>

<llo_original>
// kernel: tpu_custom_call.1
$region0: #{tpu_custom_call.1}
  #allocation0 [shape = 'u32[]', space=smem, size = 0x4, offset = 0x4, fixed_abs, tag = 'smem constant byte address 0x4 - core index']
  #allocation1 [shape = 'u32[144,128]{1,0:T(1,128)}', space=vmem, size = 0x12000, scoped, tag = 'internal scratch']
  %s0 = inlined_call_operand.vmem [shape: bf16[16,6], index: 0, kind: input, shape index: {}]
  %s1 = inlined_call_operand.vmem [shape: s32[16,3], index: 1, kind: input, shape index: {}]
  %s2 = inlined_call_operand.vmem [shape: bf16[6,16], index: 2, kind: input, shape index: {}]
  %s3 = inlined_call_operand.vmem [shape: f32[1,16], index: 3, kind: input, shape index: {}]
  %s4 = inlined_call_operand.vmem [shape: bf16[16,96], index: 4, kind: input, shape index: {}]
  %s5 = inlined_call_operand.vmem [shape: bf16[60,96], index: 5, kind: input, shape index: {}]
  %s6 = inlined_call_operand.vmem [shape: f32[1,96], index: 6, kind: input, shape index: {}]
  %s7 = inlined_call_operand.vmem [shape: bf16[96,48], index: 7, kind: input, shape index: {}]
  %s8 = inlined_call_operand.vmem [shape: f32[1,48], index: 8, kind: input, shape index: {}]
  %s9 = inlined_call_operand.vmem [shape: bf16[16,6], index: 9, kind: input, shape index: {}]
  %s10 = inlined_call_operand.vmem [shape: bf16[60,6], index: 10, kind: input, shape index: {}]
  %s11 = inlined_call_operand.vmem [shape: f32[1,6], index: 11, kind: input, shape index: {}]
  %s12 = inlined_call_operand.vmem [shape: f32[6,2], index: 12, kind: input, shape index: {}]
  %s13 = inlined_call_operand.vmem [shape: f32[6,96], index: 13, kind: input, shape index: {}]
  %s14 = inlined_call_operand.vmem [shape: f32[2,96], index: 14, kind: input, shape index: {}]
  %s15 = inlined_call_operand.vmem [shape: bf16[96,16], index: 15, kind: input, shape index: {}]
  %s16 = inlined_call_operand.vmem [shape: f32[1,16], index: 16, kind: input, shape index: {}]
  %s17 = inlined_call_operand.vmem [shape: bf16[16,2], index: 17, kind: input, shape index: {}]
  %s18 = inlined_call_operand.vmem [shape: f32[1,2], index: 18, kind: input, shape index: {}]
  %s19 = inlined_call_operand.hbm [shape: f32[2,16], index: 19, kind: output, shape index: {}]
  %s20 = sld [smem:[#allocation0]]
  $region86: #{tpu_custom_call.1} parent=0
    _
  %s22 = ssub.s32 1, %s20
  %s23 = scalar_select 0, %s22, %s20
  $region1: #{tpu_custom_call.1} parent=0
    #allocation2 [shape = 'u8[1024]{0}', space=vmem, size = 0x400, scoped, tag = 'output window, operand 0, single buffered']
    #allocation3 [shape = 's32[1]{0}', space=sflag, size = 0x4, scoped, tag = 'scoped memory for tpu_custom_call.1']
    %24 = vsyncpa [#allocation3], 0
    // Predicated region
    $region2: #{tpu_custom_call.1} parent=1 // pred_check
      _
    $region3: #{tpu_custom_call.1} parent=1 // pred_check_branch
      %26 = sbr.rel (0) target = $region5
    $region4: #{tpu_custom_call.1} parent=1 // pred_region
      _
    $region5: #{tpu_custom_call.1} parent=1 // pred_fallthru
      _
    // Predicated region
    $region6: #{tpu_custom_call.1} parent=1 // pred_check
      _
    $region7: #{tpu_custom_call.1} parent=1 // pred_check_branch
      %28 = sbr.rel (0) target = $region9
    $region8: #{tpu_custom_call.1} parent=1 // pred_region
      _
    $region9: #{tpu_custom_call.1} parent=1 // pred_fallthru
      _
    // Predicated region
    $region10: #{tpu_custom_call.1} parent=1 // pred_check
      _
    $region11: #{tpu_custom_call.1} parent=1 // pred_check_branch
      %30 = sbr.rel (0) target = $region13
    $region12: #{tpu_custom_call.1} parent=1 // pred_region
      _
    $region13: #{tpu_custom_call.1} parent=1 // pred_fallthru
      _
    // Predicated region
    $region14: #{tpu_custom_call.1} parent=1 // pred_check
      _
    $region15: #{tpu_custom_call.1} parent=1 // pred_check_branch
      %32 = sbr.rel (0) target = $region17
    $region16: #{tpu_custom_call.1} parent=1 // pred_region
      _
    $region17: #{tpu_custom_call.1} parent=1 // pred_fallthru
      _
    // Predicated region
    $region18: #{tpu_custom_call.1} parent=1 // pred_check
      _
    $region19: #{tpu_custom_call.1} parent=1 // pred_check_branch
      %34 = sbr.rel (0) target = $region21
    $region20: #{tpu_custom_call.1} parent=1 // pred_region
      _
    $region21: #{tpu_custom_call.1} parent=1 // pred_fallthru
      _
    // Predicated region
    $region22: #{tpu_custom_call.1} parent=1 // pred_check
      _
    $region23: #{tpu_custom_call.1} parent=1 // pred_check_branch
      %36 = sbr.rel (0) target = $region25
    $region24: #{tpu_custom_call.1} parent=1 // pred_region
      _
    $region25: #{tpu_custom_call.1} parent=1 // pred_fallthru
      _
    // Predicated region
    $region26: #{tpu_custom_call.1} parent=1 // pred_check
      _
    $region27: #{tpu_custom_call.1} parent=1 // pred_check_branch
      %38 = sbr.rel (0) target = $region29
    $region28: #{tpu_custom_call.1} parent=1 // pred_region
      _
    $region29: #{tpu_custom_call.1} parent=1 // pred_fallthru
      _
    // Predicated region
    $region30: #{tpu_custom_call.1} parent=1 // pred_check
      _
    $region31: #{tpu_custom_call.1} parent=1 // pred_check_branch
      %40 = sbr.rel (0) target = $region33
    $region32: #{tpu_custom_call.1} parent=1 // pred_region
      _
    $region33: #{tpu_custom_call.1} parent=1 // pred_fallthru
      _
    // Predicated region
    $region34: #{tpu_custom_call.1} parent=1 // pred_check
      _
    $region35: #{tpu_custom_call.1} parent=1 // pred_check_branch
      %42 = sbr.rel (0) target = $region37
    $region36: #{tpu_custom_call.1} parent=1 // pred_region
      _
    $region37: #{tpu_custom_call.1} parent=1 // pred_fallthru
      _
    // Predicated region
    $region38: #{tpu_custom_call.1} parent=1 // pred_check
      _
    $region39: #{tpu_custom_call.1} parent=1 // pred_check_branch
      %44 = sbr.rel (0) target = $region41
    $region40: #{tpu_custom_call.1} parent=1 // pred_region
      _
    $region41: #{tpu_custom_call.1} parent=1 // pred_fallthru
      _
    // Predicated region
    $region42: #{tpu_custom_call.1} parent=1 // pred_check
      _
    $region43: #{tpu_custom_call.1} parent=1 // pred_check_branch
      %46 = sbr.rel (0) target = $region45
    $region44: #{tpu_custom_call.1} parent=1 // pred_region
      _
    $region45: #{tpu_custom_call.1} parent=1 // pred_fallthru
      _
    // Predicated region
    $region46: #{tpu_custom_call.1} parent=1 // pred_check
      _
    $region47: #{tpu_custom_call.1} parent=1 // pred_check_branch
      %48 = sbr.rel (0) target = $region49
    $region48: #{tpu_custom_call.1} parent=1 // pred_region
      _
    $region49: #{tpu_custom_call.1} parent=1 // pred_fallthru
      _
    // Predicated region
    $region50: #{tpu_custom_call.1} parent=1 // pred_check
      _
    $region51: #{tpu_custom_call.1} parent=1 // pred_check_branch
      %50 = sbr.rel (0) target = $region53
    $region52: #{tpu_custom_call.1} parent=1 // pred_region
      _
    $region53: #{tpu_custom_call.1} parent=1 // pred_fallthru
      _
    // Predicated region
    $region54: #{tpu_custom_call.1} parent=1 // pred_check
      _
    $region55: #{tpu_custom_call.1} parent=1 // pred_check_branch
      %52 = sbr.rel (0) target = $region57
    $region56: #{tpu_custom_call.1} parent=1 // pred_region
      _
    $region57: #{tpu_custom_call.1} parent=1 // pred_fallthru
      _
    // Predicated region
    $region58: #{tpu_custom_call.1} parent=1 // pred_check
      _
    $region59: #{tpu_custom_call.1} parent=1 // pred_check_branch
      %54 = sbr.rel (0) target = $region61
    $region60: #{tpu_custom_call.1} parent=1 // pred_region
      _
    $region61: #{tpu_custom_call.1} parent=1 // pred_fallthru
      _
    // Predicated region
    $region62: #{tpu_custom_call.1} parent=1 // pred_check
      _
    $region63: #{tpu_custom_call.1} parent=1 // pred_check_branch
      %56 = sbr.rel (0) target = $region65
    $region64: #{tpu_custom_call.1} parent=1 // pred_region
      _
    $region65: #{tpu_custom_call.1} parent=1 // pred_fallthru
      _
    // Predicated region
    $region66: #{tpu_custom_call.1} parent=1 // pred_check
      _
    $region67: #{tpu_custom_call.1} parent=1 // pred_check_branch
      %58 = sbr.rel (0) target = $region69
    $region68: #{tpu_custom_call.1} parent=1 // pred_region
      _
    $region69: #{tpu_custom_call.1} parent=1 // pred_fallthru
      _
    // Predicated region
    $region70: #{tpu_custom_call.1} parent=1 // pred_check
      _
    $region71: #{tpu_custom_call.1} parent=1 // pred_check_branch
      %60 = sbr.rel (0) target = $region73
    $region72: #{tpu_custom_call.1} parent=1 // pred_region
      _
    $region73: #{tpu_custom_call.1} parent=1 // pred_fallthru
      _
    // Predicated region
    $region74: #{tpu_custom_call.1} parent=1 // pred_check
      _
    $region75: #{tpu_custom_call.1} parent=1 // pred_check_branch
      %62 = sbr.rel (0) target = $region77
    $region76: #{tpu_custom_call.1} parent=1 // pred_region
      _
    $region77: #{tpu_custom_call.1} parent=1 // pred_fallthru
      _
    %v64 = vld [vmem:[%s1] sm:$0xff]
    %v65 = vld [vmem:[%s1 + $0x8] sm:$0xff]
    %v66 = vlaneseq
    %v67 = vand.u32 %v66, 127
    %68 = vset.pattern.permute.xlu0 0
    %69 = vperm.xlu0 %68, %v64
    %v70 = vpop.permute.xlu0 %69
    %71 = vset.pattern.permute.xlu0 0
    %72 = vperm.xlu0 %71, %v65
    %v73 = vpop.permute.xlu0 %72
    %vm74 = vcmp.eq.s32.totalorder %v67, %v70
    %vm75 = vcmp.eq.s32.totalorder %v67, %v73
    %v76 = vsel %vm74, 1, 0
    %v77 = vsel %vm75, 1, 0
    %v78 = vcvt.s32.f32 %v76
    %v79 = vcvt.s32.f32 %v77
    %v80 = vpack.c.bf16 %v79, %v78
    %v81 = vadd.bf16 %v80, 0
    %v82 = vadd.s32 %v64, 10
    %v83 = vadd.s32 %v65, 10
    %84 = vset.pattern.permute.xlu0 1
    %85 = vperm.xlu0 %84, %v82
    %v86 = vpop.permute.xlu0 %85
    %87 = vset.pattern.permute.xlu0 1
    %88 = vperm.xlu0 %87, %v83
    %v89 = vpop.permute.xlu0 %88
    %vm90 = vcmp.eq.s32.totalorder %v67, %v86
    %vm91 = vcmp.eq.s32.totalorder %v67, %v89
    %v92 = vsel %vm90, 1, 0
    %v93 = vsel %vm91, 1, 0
    %v94 = vcvt.s32.f32 %v92
    %v95 = vcvt.s32.f32 %v93
    %v96 = vpack.c.bf16 %v95, %v94
    %v97 = vadd.bf16 %v81, %v96
    %v98 = vadd.s32 %v64, 30
    %v99 = vadd.s32 %v65, 30
    %100 = vset.pattern.permute.xlu0 2
    %101 = vperm.xlu0 %100, %v98
    %v102 = vpop.permute.xlu0 %101
    %103 = vset.pattern.permute.xlu0 2
    %104 = vperm.xlu0 %103, %v99
    %v105 = vpop.permute.xlu0 %104
    %vm106 = vcmp.eq.s32.totalorder %v67, %v102
    %vm107 = vcmp.eq.s32.totalorder %v67, %v105
    %v108 = vsel %vm106, 1, 0
    %v109 = vsel %vm107, 1, 0
    %v110 = vcvt.s32.f32 %v108
    %v111 = vcvt.s32.f32 %v109
    %v112 = vpack.c.bf16 %v111, %v110
    %v113 = vadd.bf16 %v97, %v112
    %v114 = vld [vmem:[%s0] sm:$0xf]
    %v115 = vld [vmem:[%s0 + $0x4] sm:$0xf]
    %v116 = vld [vmem:[%s2] sm:$0x7]
    %v117 = vld [vmem:[%s3] sm:$0x1]
    %v119 = vlaneseq
    %v120 = vshrl.u32 %v119, 7
    %v121 = vsub.s32 0, %v120
    %v122 = vrot.slane %v117, %v121
    %v126 = vunpack.c.l.b16 %v114
    %v127 = vunpack.c.l.b16 %v115
    %v128 = vpack.c.b16 %v127, %v126
    %vm129 = vcmask 48128
    %v131 = vsel %vm129, %v128, 0
    %vm133 = vcmask 1042432
    %v135 = vsel %vm133, %v116, 0
    %137 = vmatprep.subr.bf16.mxu0 0
    %138 = vmatpush1.bf16.msra.mxu0 0
    %139 = vmatprep.subr.bf16.mxu0 0
    %140 = vmatpush1.bf16.msra.mxu0 0
    %141 = vmatprep.subr.bf16.mxu0 0
    %142 = vmatpush1.bf16.msra.mxu0 0
    %143 = vmatprep.subr.bf16.mxu0 0
    %144 = vmatpush1.bf16.msra.mxu0 0
    %145 = vmatprep.subr.bf16.mxu0 0
    %146 = vmatpush1.bf16.msra.mxu0 0
    %147 = vmatprep.subr.bf16.mxu0 0
    %148 = vmatpush1.bf16.msra.mxu0 0
    %149 = vmatprep.subr.bf16.mxu0 0
    %150 = vmatpush1.bf16.msra.mxu0 0
    %151 = vmatprep.subr.bf16.mxu0 0
    %152 = vmatpush1.bf16.msra.mxu0 %v135
    %153 = vmatprep.subr.bf16.mxu0 0
    %154 = vmatpush2.bf16.msra.mxu0 0
    %155 = vmatprep.subr.bf16.mxu0 0
    %156 = vmatpush2.bf16.msra.mxu0 0
    %157 = vmatprep.subr.bf16.mxu0 0
    %158 = vmatpush2.bf16.msra.mxu0 0
    %159 = vmatprep.subr.bf16.mxu0 0
    %160 = vmatpush2.bf16.msra.mxu0 0
    %161 = vmatprep.subr.bf16.mxu0 0
    %162 = vmatpush2.bf16.msra.mxu0 0
    %163 = vmatprep.subr.bf16.mxu0 0
    %164 = vmatpush2.bf16.msra.mxu0 0
    %165 = vmatprep.subr.bf16.mxu0 0
    %166 = vmatpush2.bf16.msra.mxu0 0
    %167 = vmatprep.subr.bf16.mxu0 0
    %168 = vmatpush2.bf16.msra.mxu0 0
    %169 = vmatprep.mubr.bf16.mxu0 0
    %170 = vmatmul.mubr.bf16.gmra.mxu0 %v131
    %v171 = vpop.f32.mrf.mxu0
    %v172 = vadd.f32 %v122, %v171
    %v173 = vpop.f32.mrf.mxu0
    %v174 = vpop.f32.mrf.mxu0
    %v175 = vadd.f32 %v122, %v174
    %v176 = vpop.f32.mrf.mxu0
    %177 = vdwg.mxu0
    %v178 = vpack.c.bf16 %v175, %v172
    %v179 = vld [vmem:[%s4] sm:$0xf]
    %v180 = vld [vmem:[%s4 + $0x4] sm:$0xf]
    %v181 = vld [vmem:[%s5] sm:$0xf]
    %v182 = vld [vmem:[%s5 + $0x4] sm:$0xf]
    %v183 = vld [vmem:[%s5 + $0x8] sm:$0xf]
    %v184 = vld [vmem:[%s5 + $0xc] sm:$0xf]
    %v185 = vld [vmem:[%s5 + $0x10] sm:$0xf]
    %v186 = vld [vmem:[%s5 + $0x14] sm:$0xf]
    %v187 = vld [vmem:[%s5 + $0x18] sm:$0xf]
    %v188 = vld [vmem:[%s5 + $0x1c] sm:$0x3]
    %v197 = vunpack.c.l.b16 %v181
    %v198 = vunpack.c.l.b16 %v182
    %v199 = vunpack.c.l.b16 %v183
    %v200 = vunpack.c.l.b16 %v184
    %v201 = vunpack.c.l.b16 %v185
    %v202 = vunpack.c.l.b16 %v186
    %v203 = vunpack.c.l.b16 %v187
    %v204 = vunpack.c.l.b16 %v188
    %v205 = vpack.c.b16 %v198, %v197
    %v206 = vpack.c.b16 %v200, %v199
    %v207 = vpack.c.b16 %v202, %v201
    %v208 = vpack.c.b16 %v204, %v203
    %vm212 = vcmask 490496
    %v214 = vsel %vm212, %v113, 0
    %vm216 = vcmask 1045504
    %v218 = vsel %vm216, %v208, 0
    %220 = vmatprep.subr.bf16.mxu0 0
    %221 = vmatpush1.bf16.msra.mxu0 0
    %222 = vmatprep.subr.bf16.mxu0 0
    %223 = vmatpush1.bf16.msra.mxu0 0
    %224 = vmatprep.subr.bf16.mxu0 0
    %225 = vmatpush1.bf16.msra.mxu0 0
    %226 = vmatprep.subr.bf16.mxu0 0
    %227 = vmatpush1.bf16.msra.mxu0 0
    %228 = vmatprep.subr.bf16.mxu0 0
    %229 = vmatpush1.bf16.msra.mxu0 %v218
    %230 = vmatprep.subr.bf16.mxu0 0
    %231 = vmatpush1.bf16.msra.mxu0 %v207
    %232 = vmatprep.subr.bf16.mxu0 0
    %233 = vmatpush1.bf16.msra.mxu0 %v206
    %234 = vmatprep.subr.bf16.mxu0 0
    %235 = vmatpush1.bf16.msra.mxu0 %v205
    %236 = vmatprep.subr.bf16.mxu0 0
    %237 = vmatpush2.bf16.msra.mxu0 0
    %238 = vmatprep.subr.bf16.mxu0 0
    %239 = vmatpush2.bf16.msra.mxu0 0
    %240 = vmatprep.subr.bf16.mxu0 0
    %241 = vmatpush2.bf16.msra.mxu0 0
    %242 = vmatprep.subr.bf16.mxu0 0
    %243 = vmatpush2.bf16.msra.mxu0 0
    %244 = vmatprep.subr.bf16.mxu0 0
    %245 = vmatpush2.bf16.msra.mxu0 0
    %246 = vmatprep.subr.bf16.mxu0 0
    %247 = vmatpush2.bf16.msra.mxu0 0
    %248 = vmatprep.subr.bf16.mxu0 0
    %249 = vmatpush2.bf16.msra.mxu0 0
    %250 = vmatprep.subr.bf16.mxu0 0
    %251 = vmatpush2.bf16.msra.mxu0 0
    %252 = vmatprep.mubr.bf16.mxu0 0
    %253 = vmatmul.mubr.bf16.gmra.mxu0 %v214
    %v254 = vpop.f32.mrf.mxu0
    %v255 = vadd.f32 0.0, %v254
    %v256 = vpop.f32.mrf.mxu0
    %v257 = vpop.f32.mrf.mxu0
    %v258 = vadd.f32 0.0, %v257
    %v259 = vpop.f32.mrf.mxu0
    %260 = vdwg.mxu0
    %v263 = vunpack.c.l.b16 %v179
    %v264 = vunpack.c.l.b16 %v180
    %v265 = vpack.c.b16 %v264, %v263
    %vm267 = vcmask 130048
    %v269 = vsel %vm267, %v178, 0
    %271 = vmatprep.subr.bf16.mxu0 0
    %272 = vmatpush1.bf16.msra.mxu0 0
    %273 = vmatprep.subr.bf16.mxu0 0
    %274 = vmatpush1.bf16.msra.mxu0 0
    %275 = vmatprep.subr.bf16.mxu0 0
    %276 = vmatpush1.bf16.msra.mxu0 0
    %277 = vmatprep.subr.bf16.mxu0 0
    %278 = vmatpush1.bf16.msra.mxu0 0
    %279 = vmatprep.subr.bf16.mxu0 0
    %280 = vmatpush1.bf16.msra.mxu0 0
    %281 = vmatprep.subr.bf16.mxu0 0
    %282 = vmatpush1.bf16.msra.mxu0 0
    %283 = vmatprep.subr.bf16.mxu0 0
    %284 = vmatpush1.bf16.msra.mxu0 0
    %285 = vmatprep.subr.bf16.mxu0 0
    %286 = vmatpush1.bf16.msra.mxu0 %v265
    %287 = vmatprep.subr.bf16.mxu0 0
    %288 = vmatpush2.bf16.msra.mxu0 0
    %289 = vmatprep.subr.bf16.mxu0 0
    %290 = vmatpush2.bf16.msra.mxu0 0
    %291 = vmatprep.subr.bf16.mxu0 0
    %292 = vmatpush2.bf16.msra.mxu0 0
    %293 = vmatprep.subr.bf16.mxu0 0
    %294 = vmatpush2.bf16.msra.mxu0 0
    %295 = vmatprep.subr.bf16.mxu0 0
    %296 = vmatpush2.bf16.msra.mxu0 0
    %297 = vmatprep.subr.bf16.mxu0 0
    %298 = vmatpush2.bf16.msra.mxu0 0
    %299 = vmatprep.subr.bf16.mxu0 0
    %300 = vmatpush2.bf16.msra.mxu0 0
    %301 = vmatprep.subr.bf16.mxu0 0
    %302 = vmatpush2.bf16.msra.mxu0 0
    %303 = vmatprep.mubr.bf16.mxu0 0
    %304 = vmatmul.mubr.bf16.gmra.mxu0 %v269
    %v305 = vpop.f32.mrf.mxu0
    %v306 = vadd.f32 %v255, %v305
    %v307 = vpop.f32.mrf.mxu0
    %v308 = vpop.f32.mrf.mxu0
    %v309 = vadd.f32 %v258, %v308
    %v310 = vpop.f32.mrf.mxu0
    %311 = vdwg.mxu0
    %v312 = vld [vmem:[%s6] sm:$0x1]
    %v314 = vlaneseq
    %v315 = vshrl.u32 %v314, 7
    %v316 = vsub.s32 0, %v315
    %v317 = vrot.slane %v312, %v316
    %v319 = vadd.f32 %v306, %v317
    %v320 = vadd.f32 %v309, %v317
    %v321 = vmax.f32 %v319, 0.0
    %v322 = vmax.f32 %v320, 0.0
    %v323 = vpack.c.bf16 %v322, %v321
    %v324 = vld [vmem:[%s7] sm:$0xf]
    %v325 = vld [vmem:[%s7 + $0x4] sm:$0xf]
    %v326 = vld [vmem:[%s7 + $0x8] sm:$0xf]
    %v327 = vld [vmem:[%s7 + $0xc] sm:$0xf]
    %v328 = vld [vmem:[%s7 + $0x10] sm:$0xf]
    %v329 = vld [vmem:[%s7 + $0x14] sm:$0xf]
    %v330 = vld [vmem:[%s7 + $0x18] sm:$0xf]
    %v331 = vld [vmem:[%s7 + $0x1c] sm:$0xf]
    %v332 = vld [vmem:[%s7 + $0x20] sm:$0xf]
    %v333 = vld [vmem:[%s7 + $0x24] sm:$0xf]
    %v334 = vld [vmem:[%s7 + $0x28] sm:$0xf]
    %v335 = vld [vmem:[%s7 + $0x2c] sm:$0xf]
    %v336 = vld [vmem:[%s8] sm:$0x1]
    %v338 = vlaneseq
    %v339 = vshrl.u32 %v338, 7
    %v340 = vsub.s32 0, %v339
    %v341 = vrot.slane %v336, %v340
    %v355 = vunpack.c.l.b16 %v324
    %v356 = vunpack.c.l.b16 %v325
    %v357 = vunpack.c.l.b16 %v326
    %v358 = vunpack.c.l.b16 %v327
    %v359 = vunpack.c.l.b16 %v328
    %v360 = vunpack.c.l.b16 %v329
    %v361 = vunpack.c.l.b16 %v330
    %v362 = vunpack.c.l.b16 %v331
    %v363 = vunpack.c.l.b16 %v332
    %v364 = vunpack.c.l.b16 %v333
    %v365 = vunpack.c.l.b16 %v334
    %v366 = vunpack.c.l.b16 %v335
    %v367 = vpack.c.b16 %v356, %v355
    %v368 = vpack.c.b16 %v358, %v357
    %v369 = vpack.c.b16 %v360, %v359
    %v370 = vpack.c.b16 %v362, %v361
    %v371 = vpack.c.b16 %v364, %v363
    %v372 = vpack.c.b16 %v366, %v365
    %vm379 = vcmask 785408
    %v381 = vsel %vm379, %v323, 0
    %383 = vmatprep.subr.bf16.mxu0 0
    %384 = vmatpush1.bf16.msra.mxu0 0
    %385 = vmatprep.subr.bf16.mxu0 0
    %386 = vmatpush1.bf16.msra.mxu0 0
    %387 = vmatprep.subr.bf16.mxu0 0
    %388 = vmatpush1.bf16.msra.mxu0 %v372
    %389 = vmatprep.subr.bf16.mxu0 0
    %390 = vmatpush1.bf16.msra.mxu0 %v371
    %391 = vmatprep.subr.bf16.mxu0 0
    %392 = vmatpush1.bf16.msra.mxu0 %v370
    %393 = vmatprep.subr.bf16.mxu0 0
    %394 = vmatpush1.bf16.msra.mxu0 %v369
    %395 = vmatprep.subr.bf16.mxu0 0
    %396 = vmatpush1.bf16.msra.mxu0 %v368
    %397 = vmatprep.subr.bf16.mxu0 0
    %398 = vmatpush1.bf16.msra.mxu0 %v367
    %399 = vmatprep.subr.bf16.mxu0 0
    %400 = vmatpush2.bf16.msra.mxu0 0
    %401 = vmatprep.subr.bf16.mxu0 0
    %402 = vmatpush2.bf16.msra.mxu0 0
    %403 = vmatprep.subr.bf16.mxu0 0
    %404 = vmatpush2.bf16.msra.mxu0 0
    %405 = vmatprep.subr.bf16.mxu0 0
    %406 = vmatpush2.bf16.msra.mxu0 0
    %407 = vmatprep.subr.bf16.mxu0 0
    %408 = vmatpush2.bf16.msra.mxu0 0
    %409 = vmatprep.subr.bf16.mxu0 0
    %410 = vmatpush2.bf16.msra.mxu0 0
    %411 = vmatprep.subr.bf16.mxu0 0
    %412 = vmatpush2.bf16.msra.mxu0 0
    %413 = vmatprep.subr.bf16.mxu0 0
    %414 = vmatpush2.bf16.msra.mxu0 0
    %415 = vmatprep.mubr.bf16.mxu0 0
    %416 = vmatmul.mubr.bf16.gmra.mxu0 %v381
    %v417 = vpop.f32.mrf.mxu0
    %v418 = vadd.f32 %v341, %v417
    %v419 = vpop.f32.mrf.mxu0
    %v420 = vpop.f32.mrf.mxu0
    %v421 = vadd.f32 %v341, %v420
    %v422 = vpop.f32.mrf.mxu0
    %423 = vdwg.mxu0
    %v424 = vmax.f32 %v418, 0.0
    %v425 = vmax.f32 %v421, 0.0
    %v426 = vld [vmem:[%s9] sm:$0xf]
    %v427 = vld [vmem:[%s9 + $0x4] sm:$0xf]
    %v428 = vld [vmem:[%s10] sm:$0xf]
    %v429 = vld [vmem:[%s10 + $0x4] sm:$0xf]
    %v430 = vld [vmem:[%s10 + $0x8] sm:$0xf]
    %v431 = vld [vmem:[%s10 + $0xc] sm:$0xf]
    %v432 = vld [vmem:[%s10 + $0x10] sm:$0xf]
    %v433 = vld [vmem:[%s10 + $0x14] sm:$0xf]
    %v434 = vld [vmem:[%s10 + $0x18] sm:$0xf]
    %v435 = vld [vmem:[%s10 + $0x1c] sm:$0x3]
    %v444 = vunpack.c.l.b16 %v428
    %v445 = vunpack.c.l.b16 %v429
    %v446 = vunpack.c.l.b16 %v430
    %v447 = vunpack.c.l.b16 %v431
    %v448 = vunpack.c.l.b16 %v432
    %v449 = vunpack.c.l.b16 %v433
    %v450 = vunpack.c.l.b16 %v434
    %v451 = vunpack.c.l.b16 %v435
    %v452 = vpack.c.b16 %v445, %v444
    %v453 = vpack.c.b16 %v447, %v446
    %v454 = vpack.c.b16 %v449, %v448
    %v455 = vpack.c.b16 %v451, %v450
    %v460 = vsel %vm216, %v455, 0
    %462 = vmatprep.subr.bf16.mxu0 0
    %463 = vmatpush1.bf16.msra.mxu0 0
    %464 = vmatprep.subr.bf16.mxu0 0
    %465 = vmatpush1.bf16.msra.mxu0 0
    %466 = vmatprep.subr.bf16.mxu0 0
    %467 = vmatpush1.bf16.msra.mxu0 0
    %468 = vmatprep.subr.bf16.mxu0 0
    %469 = vmatpush1.bf16.msra.mxu0 0
    %470 = vmatprep.subr.bf16.mxu0 0
    %471 = vmatpush1.bf16.msra.mxu0 %v460
    %472 = vmatprep.subr.bf16.mxu0 0
    %473 = vmatpush1.bf16.msra.mxu0 %v454
    %474 = vmatprep.subr.bf16.mxu0 0
    %475 = vmatpush1.bf16.msra.mxu0 %v453
    %476 = vmatprep.subr.bf16.mxu0 0
    %477 = vmatpush1.bf16.msra.mxu0 %v452
    %478 = vmatprep.subr.bf16.mxu0 0
    %479 = vmatpush2.bf16.msra.mxu0 0
    %480 = vmatprep.subr.bf16.mxu0 0
    %481 = vmatpush2.bf16.msra.mxu0 0
    %482 = vmatprep.subr.bf16.mxu0 0
    %483 = vmatpush2.bf16.msra.mxu0 0
    %484 = vmatprep.subr.bf16.mxu0 0
    %485 = vmatpush2.bf16.msra.mxu0 0
    %486 = vmatprep.subr.bf16.mxu0 0
    %487 = vmatpush2.bf16.msra.mxu0 0
    %488 = vmatprep.subr.bf16.mxu0 0
    %489 = vmatpush2.bf16.msra.mxu0 0
    %490 = vmatprep.subr.bf16.mxu0 0
    %491 = vmatpush2.bf16.msra.mxu0 0
    %492 = vmatprep.subr.bf16.mxu0 0
    %493 = vmatpush2.bf16.msra.mxu0 0
    %494 = vmatprep.mubr.bf16.mxu0 0
    %495 = vmatmul.mubr.bf16.gmra.mxu0 %v214
    %v496 = vpop.f32.mrf.mxu0
    %v497 = vadd.f32 0.0, %v496
    %v498 = vpop.f32.mrf.mxu0
    %v499 = vpop.f32.mrf.mxu0
    %v500 = vadd.f32 0.0, %v499
    %v501 = vpop.f32.mrf.mxu0
    %502 = vdwg.mxu0
    %v505 = vunpack.c.l.b16 %v426
    %v506 = vunpack.c.l.b16 %v427
    %v507 = vpack.c.b16 %v506, %v505
    %509 = vmatprep.subr.bf16.mxu0 0
    %510 = vmatpush1.bf16.msra.mxu0 0
    %511 = vmatprep.subr.bf16.mxu0 0
    %512 = vmatpush1.bf16.msra.mxu0 0
    %513 = vmatprep.subr.bf16.mxu0 0
    %514 = vmatpush1.bf16.msra.mxu0 0
    %515 = vmatprep.subr.bf16.mxu0 0
    %516 = vmatpush1.bf16.msra.mxu0 0
    %517 = vmatprep.subr.bf16.mxu0 0
    %518 = vmatpush1.bf16.msra.mxu0 0
    %519 = vmatprep.subr.bf16.mxu0 0
    %520 = vmatpush1.bf16.msra.mxu0 0
    %521 = vmatprep.subr.bf16.mxu0 0
    %522 = vmatpush1.bf16.msra.mxu0 0
    %523 = vmatprep.subr.bf16.mxu0 0
    %524 = vmatpush1.bf16.msra.mxu0 %v507
    %525 = vmatprep.subr.bf16.mxu0 0
    %526 = vmatpush2.bf16.msra.mxu0 0
    %527 = vmatprep.subr.bf16.mxu0 0
    %528 = vmatpush2.bf16.msra.mxu0 0
    %529 = vmatprep.subr.bf16.mxu0 0
    %530 = vmatpush2.bf16.msra.mxu0 0
    %531 = vmatprep.subr.bf16.mxu0 0
    %532 = vmatpush2.bf16.msra.mxu0 0
    %533 = vmatprep.subr.bf16.mxu0 0
    %534 = vmatpush2.bf16.msra.mxu0 0
    %535 = vmatprep.subr.bf16.mxu0 0
    %536 = vmatpush2.bf16.msra.mxu0 0
    %537 = vmatprep.subr.bf16.mxu0 0
    %538 = vmatpush2.bf16.msra.mxu0 0
    %539 = vmatprep.subr.bf16.mxu0 0
    %540 = vmatpush2.bf16.msra.mxu0 0
    %541 = vmatprep.mubr.bf16.mxu0 0
    %542 = vmatmul.mubr.bf16.gmra.mxu0 %v269
    %v543 = vpop.f32.mrf.mxu0
    %v544 = vadd.f32 %v497, %v543
    %v545 = vpop.f32.mrf.mxu0
    %v546 = vpop.f32.mrf.mxu0
    %v547 = vadd.f32 %v500, %v546
    %v548 = vpop.f32.mrf.mxu0
    %549 = vdwg.mxu0
    %v550 = vld [vmem:[%s11] sm:$0x1]
    %v552 = vlaneseq
    %v553 = vshrl.u32 %v552, 7
    %v554 = vsub.s32 0, %v553
    %v555 = vrot.slane %v550, %v554
    %v557 = vadd.f32 %v544, %v555
    %v558 = vadd.f32 %v547, %v555
    %v559 = vsel %vm129, %v557, -inf
    %560 = vmax.xlane.f32.xlu0 %v559
    %v561 = vpop.xlane.xlu0 %560
    %v562 = vsel %vm129, %v558, -inf
    %563 = vmax.xlane.f32.xlu0 %v562
    %v564 = vpop.xlane.xlu0 %563
    %v565 = vsub.f32 %v557, %v561
    %v566 = vsub.f32 %v558, %v564
    %v567 = vmul.f32 %v565, 1.442695
    %v568 = vpow.pop %v567
    %v569 = vmul.f32 %v566, 1.442695
    %v570 = vpow.pop %v569
    %v571 = vld [vmem:[%s12] sm:$0x3f]
    %v573 = vsel %vm129, %v568, 0
    %v576 = vsel %vm129, %v570, 0
    %v579 = vsel %vm216, %v571, 0
    %581 = vmatprep.subr.mxu0 0.0
    %582 = vmatpush1.msra.mxu0 0.0
    %583 = vmatprep.subr.mxu0 0.0
    %584 = vmatpush1.msra.mxu0 0.0
    %585 = vmatprep.subr.mxu0 0.0
    %586 = vmatpush1.msra.mxu0 0.0
    %587 = vmatprep.subr.mxu0 0.0
    %588 = vmatpush1.msra.mxu0 0.0
    %589 = vmatprep.subr.mxu0 0.0
    %590 = vmatpush1.msra.mxu0 0.0
    %591 = vmatprep.subr.mxu0 0.0
    %592 = vmatpush1.msra.mxu0 0.0
    %593 = vmatprep.subr.mxu0 0.0
    %594 = vmatpush1.msra.mxu0 0.0
    %595 = vmatprep.subr.mxu0 0.0
    %596 = vmatpush1.msra.mxu0 0.0
    %597 = vmatprep.subr.mxu0 0.0
    %598 = vmatpush1.msra.mxu0 0.0
    %599 = vmatprep.subr.mxu0 0.0
    %600 = vmatpush1.msra.mxu0 0.0
    %601 = vmatprep.subr.mxu0 0.0
    %602 = vmatpush1.msra.mxu0 0.0
    %603 = vmatprep.subr.mxu0 0.0
    %604 = vmatpush1.msra.mxu0 0.0
    %605 = vmatprep.subr.mxu0 0.0
    %606 = vmatpush1.msra.mxu0 0.0
    %607 = vmatprep.subr.mxu0 0.0
    %608 = vmatpush1.msra.mxu0 0.0
    %609 = vmatprep.subr.mxu0 0.0
    %610 = vmatpush1.msra.mxu0 0.0
    %611 = vmatprep.subr.mxu0 0.0
    %612 = vmatpush1.msra.mxu0 %v579
    %613 = vmatprep.subr.mxu0 0.0
    %614 = vmatpush2.msra.mxu0 0.0
    %615 = vmatprep.subr.mxu0 0.0
    %616 = vmatpush2.msra.mxu0 0.0
    %617 = vmatprep.subr.mxu0 0.0
    %618 = vmatpush2.msra.mxu0 0.0
    %619 = vmatprep.subr.mxu0 0.0
    %620 = vmatpush2.msra.mxu0 0.0
    %621 = vmatprep.subr.mxu0 0.0
    %622 = vmatpush2.msra.mxu0 0.0
    %623 = vmatprep.subr.mxu0 0.0
    %624 = vmatpush2.msra.mxu0 0.0
    %625 = vmatprep.subr.mxu0 0.0
    %626 = vmatpush2.msra.mxu0 0.0
    %627 = vmatprep.subr.mxu0 0.0
    %628 = vmatpush2.msra.mxu0 0.0
    %629 = vmatprep.subr.mxu0 0.0
    %630 = vmatpush2.msra.mxu0 0.0
    %631 = vmatprep.subr.mxu0 0.0
    %632 = vmatpush2.msra.mxu0 0.0
    %633 = vmatprep.subr.mxu0 0.0
    %634 = vmatpush2.msra.mxu0 0.0
    %635 = vmatprep.subr.mxu0 0.0
    %636 = vmatpush2.msra.mxu0 0.0
    %637 = vmatprep.subr.mxu0 0.0
    %638 = vmatpush2.msra.mxu0 0.0
    %639 = vmatprep.subr.mxu0 0.0
    %640 = vmatpush2.msra.mxu0 0.0
    %641 = vmatprep.subr.mxu0 0.0
    %642 = vmatpush2.msra.mxu0 0.0
    %643 = vmatprep.subr.mxu0 0.0
    %644 = vmatpush2.msra.mxu0 0.0
    %645 = vmatprep.mubr.f32.mxu0 0.0
    %646 = vmatmul.mubr.f32.gmra.mxu0 %v573
    %v647 = vpop.f32.mrf.mxu0
    %v648 = vadd.f32 0.0, %v647
    %v649 = vpop.f32.mrf.mxu0
    %650 = vmatprep.mubr.f32.mxu0 0.0
    %651 = vmatmul.mubr.f32.gmra.mxu0 %v576
    %v652 = vpop.f32.mrf.mxu0
    %v653 = vadd.f32 0.0, %v652
    %v654 = vpop.f32.mrf.mxu0
    %655 = vdwg.mxu0
    %v656 = vrcp.pop %v648
    %v657 = vmul.f32 1.0, %v656
    %v658 = vrcp.pop %v653
    %v659 = vmul.f32 1.0, %v658
    %v660 = vld [vmem:[%s13] sm:$0x3f]
    %v662 = vsel %vm216, %v660, 0
    %664 = vmatprep.subr.mxu0 0.0
    %665 = vmatpush1.msra.mxu0 0.0
    %666 = vmatprep.subr.mxu0 0.0
    %667 = vmatpush1.msra.mxu0 0.0
    %668 = vmatprep.subr.mxu0 0.0
    %669 = vmatpush1.msra.mxu0 0.0
    %670 = vmatprep.subr.mxu0 0.0
    %671 = vmatpush1.msra.mxu0 0.0
    %672 = vmatprep.subr.mxu0 0.0
    %673 = vmatpush1.msra.mxu0 0.0
    %674 = vmatprep.subr.mxu0 0.0
    %675 = vmatpush1.msra.mxu0 0.0
    %676 = vmatprep.subr.mxu0 0.0
    %677 = vmatpush1.msra.mxu0 0.0
    %678 = vmatprep.subr.mxu0 0.0
    %679 = vmatpush1.msra.mxu0 0.0
    %680 = vmatprep.subr.mxu0 0.0
    %681 = vmatpush1.msra.mxu0 0.0
    %682 = vmatprep.subr.mxu0 0.0
    %683 = vmatpush1.msra.mxu0 0.0
    %684 = vmatprep.subr.mxu0 0.0
    %685 = vmatpush1.msra.mxu0 0.0
    %686 = vmatprep.subr.mxu0 0.0
    %687 = vmatpush1.msra.mxu0 0.0
    %688 = vmatprep.subr.mxu0 0.0
    %689 = vmatpush1.msra.mxu0 0.0
    %690 = vmatprep.subr.mxu0 0.0
    %691 = vmatpush1.msra.mxu0 0.0
    %692 = vmatprep.subr.mxu0 0.0
    %693 = vmatpush1.msra.mxu0 0.0
    %694 = vmatprep.subr.mxu0 0.0
    %695 = vmatpush1.msra.mxu0 %v662
    %696 = vmatprep.subr.mxu0 0.0
    %697 = vmatpush2.msra.mxu0 0.0
    %698 = vmatprep.subr.mxu0 0.0
    %699 = vmatpush2.msra.mxu0 0.0
    %700 = vmatprep.subr.mxu0 0.0
    %701 = vmatpush2.msra.mxu0 0.0
    %702 = vmatprep.subr.mxu0 0.0
    %703 = vmatpush2.msra.mxu0 0.0
    %704 = vmatprep.subr.mxu0 0.0
    %705 = vmatpush2.msra.mxu0 0.0
    %706 = vmatprep.subr.mxu0 0.0
    %707 = vmatpush2.msra.mxu0 0.0
    %708 = vmatprep.subr.mxu0 0.0
    %709 = vmatpush2.msra.mxu0 0.0
    %710 = vmatprep.subr.mxu0 0.0
    %711 = vmatpush2.msra.mxu0 0.0
    %712 = vmatprep.subr.mxu0 0.0
    %713 = vmatpush2.msra.mxu0 0.0
    %714 = vmatprep.subr.mxu0 0.0
    %715 = vmatpush2.msra.mxu0 0.0
    %716 = vmatprep.subr.mxu0 0.0
    %717 = vmatpush2.msra.mxu0 0.0
    %718 = vmatprep.subr.mxu0 0.0
    %719 = vmatpush2.msra.mxu0 0.0
    %720 = vmatprep.subr.mxu0 0.0
    %721 = vmatpush2.msra.mxu0 0.0
    %722 = vmatprep.subr.mxu0 0.0
    %723 = vmatpush2.msra.mxu0 0.0
    %724 = vmatprep.subr.mxu0 0.0
    %725 = vmatpush2.msra.mxu0 0.0
    %726 = vmatprep.subr.mxu0 0.0
    %727 = vmatpush2.msra.mxu0 0.0
    %728 = vmatprep.mubr.f32.mxu0 0.0
    %729 = vmatmul.mubr.f32.gmra.mxu0 %v573
    %v730 = vpop.f32.mrf.mxu0
    %v731 = vadd.f32 0.0, %v730
    %v732 = vpop.f32.mrf.mxu0
    %733 = vmatprep.mubr.f32.mxu0 0.0
    %734 = vmatmul.mubr.f32.gmra.mxu0 %v576
    %v735 = vpop.f32.mrf.mxu0
    %v736 = vadd.f32 0.0, %v735
    %v737 = vpop.f32.mrf.mxu0
    %738 = vdwg.mxu0
    %v739 = vld [vmem:[%s14] sm:$0x3]
    %vm740 = vcmask 15360
    %v742 = vsel %vm740, %v657, 0
    %v745 = vsel %vm740, %v659, 0
    %vm747 = vcmask 1041408
    %v749 = vsel %vm747, %v739, 0
    %751 = vmatprep.subr.mxu0 0.0
    %752 = vmatpush1.msra.mxu0 0.0
    %753 = vmatprep.subr.mxu0 0.0
    %754 = vmatpush1.msra.mxu0 0.0
    %755 = vmatprep.subr.mxu0 0.0
    %756 = vmatpush1.msra.mxu0 0.0
    %757 = vmatprep.subr.mxu0 0.0
    %758 = vmatpush1.msra.mxu0 0.0
    %759 = vmatprep.subr.mxu0 0.0
    %760 = vmatpush1.msra.mxu0 0.0
    %761 = vmatprep.subr.mxu0 0.0
    %762 = vmatpush1.msra.mxu0 0.0
    %763 = vmatprep.subr.mxu0 0.0
    %764 = vmatpush1.msra.mxu0 0.0
    %765 = vmatprep.subr.mxu0 0.0
    %766 = vmatpush1.msra.mxu0 0.0
    %767 = vmatprep.subr.mxu0 0.0
    %768 = vmatpush1.msra.mxu0 0.0
    %769 = vmatprep.subr.mxu0 0.0
    %770 = vmatpush1.msra.mxu0 0.0
    %771 = vmatprep.subr.mxu0 0.0
    %772 = vmatpush1.msra.mxu0 0.0
    %773 = vmatprep.subr.mxu0 0.0
    %774 = vmatpush1.msra.mxu0 0.0
    %775 = vmatprep.subr.mxu0 0.0
    %776 = vmatpush1.msra.mxu0 0.0
    %777 = vmatprep.subr.mxu0 0.0
    %778 = vmatpush1.msra.mxu0 0.0
    %779 = vmatprep.subr.mxu0 0.0
    %780 = vmatpush1.msra.mxu0 0.0
    %781 = vmatprep.subr.mxu0 0.0
    %782 = vmatpush1.msra.mxu0 %v749
    %783 = vmatprep.subr.mxu0 0.0
    %784 = vmatpush2.msra.mxu0 0.0
    %785 = vmatprep.subr.mxu0 0.0
    %786 = vmatpush2.msra.mxu0 0.0
    %787 = vmatprep.subr.mxu0 0.0
    %788 = vmatpush2.msra.mxu0 0.0
    %789 = vmatprep.subr.mxu0 0.0
    %790 = vmatpush2.msra.mxu0 0.0
    %791 = vmatprep.subr.mxu0 0.0
    %792 = vmatpush2.msra.mxu0 0.0
    %793 = vmatprep.subr.mxu0 0.0
    %794 = vmatpush2.msra.mxu0 0.0
    %795 = vmatprep.subr.mxu0 0.0
    %796 = vmatpush2.msra.mxu0 0.0
    %797 = vmatprep.subr.mxu0 0.0
    %798 = vmatpush2.msra.mxu0 0.0
    %799 = vmatprep.subr.mxu0 0.0
    %800 = vmatpush2.msra.mxu0 0.0
    %801 = vmatprep.subr.mxu0 0.0
    %802 = vmatpush2.msra.mxu0 0.0
    %803 = vmatprep.subr.mxu0 0.0
    %804 = vmatpush2.msra.mxu0 0.0
    %805 = vmatprep.subr.mxu0 0.0
    %806 = vmatpush2.msra.mxu0 0.0
    %807 = vmatprep.subr.mxu0 0.0
    %808 = vmatpush2.msra.mxu0 0.0
    %809 = vmatprep.subr.mxu0 0.0
    %810 = vmatpush2.msra.mxu0 0.0
    %811 = vmatprep.subr.mxu0 0.0
    %812 = vmatpush2.msra.mxu0 0.0
    %813 = vmatprep.subr.mxu0 0.0
    %814 = vmatpush2.msra.mxu0 0.0
    %815 = vmatprep.mubr.f32.mxu0 0.0
    %816 = vmatmul.mubr.f32.gmra.mxu0 %v742
    %v817 = vpop.f32.mrf.mxu0
    %v818 = vadd.f32 0.0, %v817
    %v819 = vpop.f32.mrf.mxu0
    %820 = vmatprep.mubr.f32.mxu0 0.0
    %821 = vmatmul.mubr.f32.gmra.mxu0 %v745
    %v822 = vpop.f32.mrf.mxu0
    %v823 = vadd.f32 0.0, %v822
    %v824 = vpop.f32.mrf.mxu0
    %825 = vdwg.mxu0
    %v826 = vmul.f32 %v731, %v818
    %v827 = vmul.f32 %v736, %v823
    %830 = vrot.lane.b32.xlu0 %v424, 48
    %v831 = vpop.permute.xlu0 %830
    %832 = vrot.lane.b32.xlu0 %v425, 48
    %v833 = vpop.permute.xlu0 %832
    %vm836 = vcmask 392192
    %v837 = vsel %vm836, %v424, %v831
    %v838 = vsel %vm836, %v425, %v833
    %v839 = vmul.f32 %v826, %v837
    %v840 = vmul.f32 %v827, %v838
    %v841 = vpack.c.bf16 %v840, %v839
    %v842 = vld [vmem:[%s15] sm:$0xf]
    %v843 = vld [vmem:[%s15 + $0x4] sm:$0xf]
    %v844 = vld [vmem:[%s15 + $0x8] sm:$0xf]
    %v845 = vld [vmem:[%s15 + $0xc] sm:$0xf]
    %v846 = vld [vmem:[%s15 + $0x10] sm:$0xf]
    %v847 = vld [vmem:[%s15 + $0x14] sm:$0xf]
    %v848 = vld [vmem:[%s15 + $0x18] sm:$0xf]
    %v849 = vld [vmem:[%s15 + $0x1c] sm:$0xf]
    %v850 = vld [vmem:[%s15 + $0x20] sm:$0xf]
    %v851 = vld [vmem:[%s15 + $0x24] sm:$0xf]
    %v852 = vld [vmem:[%s15 + $0x28] sm:$0xf]
    %v853 = vld [vmem:[%s15 + $0x2c] sm:$0xf]
    %v854 = vld [vmem:[%s16] sm:$0x1]
    %v856 = vlaneseq
    %v857 = vshrl.u32 %v856, 7
    %v858 = vsub.s32 0, %v857
    %v859 = vrot.slane %v854, %v858
    %v873 = vunpack.c.l.b16 %v842
    %v874 = vunpack.c.l.b16 %v843
    %v875 = vunpack.c.l.b16 %v844
    %v876 = vunpack.c.l.b16 %v845
    %v877 = vunpack.c.l.b16 %v846
    %v878 = vunpack.c.l.b16 %v847
    %v879 = vunpack.c.l.b16 %v848
    %v880 = vunpack.c.l.b16 %v849
    %v881 = vunpack.c.l.b16 %v850
    %v882 = vunpack.c.l.b16 %v851
    %v883 = vunpack.c.l.b16 %v852
    %v884 = vunpack.c.l.b16 %v853
    %v885 = vpack.c.b16 %v874, %v873
    %v886 = vpack.c.b16 %v876, %v875
    %v887 = vpack.c.b16 %v878, %v877
    %v888 = vpack.c.b16 %v880, %v879
    %v889 = vpack.c.b16 %v882, %v881
    %v890 = vpack.c.b16 %v884, %v883
    %v898 = vsel %vm379, %v841, 0
    %900 = vmatprep.subr.bf16.mxu0 0
    %901 = vmatpush1.bf16.msra.mxu0 0
    %902 = vmatprep.subr.bf16.mxu0 0
    %903 = vmatpush1.bf16.msra.mxu0 0
    %904 = vmatprep.subr.bf16.mxu0 0
    %905 = vmatpush1.bf16.msra.mxu0 %v890
    %906 = vmatprep.subr.bf16.mxu0 0
    %907 = vmatpush1.bf16.msra.mxu0 %v889
    %908 = vmatprep.subr.bf16.mxu0 0
    %909 = vmatpush1.bf16.msra.mxu0 %v888
    %910 = vmatprep.subr.bf16.mxu0 0
    %911 = vmatpush1.bf16.msra.mxu0 %v887
    %912 = vmatprep.subr.bf16.mxu0 0
    %913 = vmatpush1.bf16.msra.mxu0 %v886
    %914 = vmatprep.subr.bf16.mxu0 0
    %915 = vmatpush1.bf16.msra.mxu0 %v885
    %916 = vmatprep.subr.bf16.mxu0 0
    %917 = vmatpush2.bf16.msra.mxu0 0
    %918 = vmatprep.subr.bf16.mxu0 0
    %919 = vmatpush2.bf16.msra.mxu0 0
    %920 = vmatprep.subr.bf16.mxu0 0
    %921 = vmatpush2.bf16.msra.mxu0 0
    %922 = vmatprep.subr.bf16.mxu0 0
    %923 = vmatpush2.bf16.msra.mxu0 0
    %924 = vmatprep.subr.bf16.mxu0 0
    %925 = vmatpush2.bf16.msra.mxu0 0
    %926 = vmatprep.subr.bf16.mxu0 0
    %927 = vmatpush2.bf16.msra.mxu0 0
    %928 = vmatprep.subr.bf16.mxu0 0
    %929 = vmatpush2.bf16.msra.mxu0 0
    %930 = vmatprep.subr.bf16.mxu0 0
    %931 = vmatpush2.bf16.msra.mxu0 0
    %932 = vmatprep.mubr.bf16.mxu0 0
    %933 = vmatmul.mubr.bf16.gmra.mxu0 %v898
    %v934 = vpop.f32.mrf.mxu0
    %v935 = vadd.f32 %v859, %v934
    %v936 = vpop.f32.mrf.mxu0
    %v937 = vpop.f32.mrf.mxu0
    %v938 = vadd.f32 %v859, %v937
    %v939 = vpop.f32.mrf.mxu0
    %940 = vdwg.mxu0
    %v941 = vmax.f32 %v935, 0.0
    %v942 = vmax.f32 %v938, 0.0
    %v943 = vpack.c.bf16 %v942, %v941
    %v944 = vld [vmem:[%s17] sm:$0xf]
    %v945 = vld [vmem:[%s17 + $0x4] sm:$0xf]
    %v946 = vld [vmem:[%s18] sm:$0x1]
    %v948 = vlaneseq
    %v949 = vshrl.u32 %v948, 7
    %v950 = vsub.s32 0, %v949
    %v951 = vrot.slane %v946, %v950
    %v955 = vunpack.c.l.b16 %v944
    %v956 = vunpack.c.l.b16 %v945
    %v957 = vpack.c.b16 %v956, %v955
    %v960 = vsel %vm267, %v943, 0
    %962 = vmatprep.subr.bf16.mxu0 0
    %963 = vmatpush1.bf16.msra.mxu0 0
    %964 = vmatprep.subr.bf16.mxu0 0
    %965 = vmatpush1.bf16.msra.mxu0 0
    %966 = vmatprep.subr.bf16.mxu0 0
    %967 = vmatpush1.bf16.msra.mxu0 0
    %968 = vmatprep.subr.bf16.mxu0 0
    %969 = vmatpush1.bf16.msra.mxu0 0
    %970 = vmatprep.subr.bf16.mxu0 0
    %971 = vmatpush1.bf16.msra.mxu0 0
    %972 = vmatprep.subr.bf16.mxu0 0
    %973 = vmatpush1.bf16.msra.mxu0 0
    %974 = vmatprep.subr.bf16.mxu0 0
    %975 = vmatpush1.bf16.msra.mxu0 0
    %976 = vmatprep.subr.bf16.mxu0 0
    %977 = vmatpush1.bf16.msra.mxu0 %v957
    %978 = vmatprep.subr.bf16.mxu0 0
    %979 = vmatpush2.bf16.msra.mxu0 0
    %980 = vmatprep.subr.bf16.mxu0 0
    %981 = vmatpush2.bf16.msra.mxu0 0
    %982 = vmatprep.subr.bf16.mxu0 0
    %983 = vmatpush2.bf16.msra.mxu0 0
    %984 = vmatprep.subr.bf16.mxu0 0
    %985 = vmatpush2.bf16.msra.mxu0 0
    %986 = vmatprep.subr.bf16.mxu0 0
    %987 = vmatpush2.bf16.msra.mxu0 0
    %988 = vmatprep.subr.bf16.mxu0 0
    %989 = vmatpush2.bf16.msra.mxu0 0
    %990 = vmatprep.subr.bf16.mxu0 0
    %991 = vmatpush2.bf16.msra.mxu0 0
    %992 = vmatprep.subr.bf16.mxu0 0
    %993 = vmatpush2.bf16.msra.mxu0 0
    %994 = vmatprep.mubr.bf16.mxu0 0
    %995 = vmatmul.mubr.bf16.gmra.mxu0 %v960
    %v996 = vpop.f32.mrf.mxu0
    %v997 = vadd.f32 %v951, %v996
    %v998 = vpop.f32.mrf.mxu0
    %v999 = vpop.f32.mrf.mxu0
    %v1000 = vadd.f32 %v951, %v999
    %v1001 = vpop.f32.mrf.mxu0
    %1002 = vdwg.mxu0
    %v1003 = vxor.u32 %v997, 2147483648
    %v1004 = vxor.u32 %v1000, 2147483648
    %v1005 = vmul.f32 %v1003, 1.442695
    %v1006 = vpow.pop %v1005
    %v1007 = vmul.f32 %v1004, 1.442695
    %v1008 = vpow.pop %v1007
    %v1009 = vadd.f32 %v1006, 1.0
    %v1010 = vadd.f32 %v1008, 1.0
    %v1011 = vrcp.pop %v1009
    %v1012 = vmul.f32 1.0, %v1011
    %v1013 = vrcp.pop %v1010
    %v1014 = vmul.f32 1.0, %v1013
    %1015 = vxpose.xlu0.b32.start [1/16] %v1012, 128
    %1016 = vxpose.xlu0.b32.cont [2/16] %v1014, 128
    %1017 = vxpose.xlu0.b32.cont [3/16] 0.0, 128
    %1018 = vxpose.xlu0.b32.cont [4/16] 0.0, 128
    %1019 = vxpose.xlu0.b32.cont [5/16] 0.0, 128
    %1020 = vxpose.xlu0.b32.cont [6/16] 0.0, 128
    %1021 = vxpose.xlu0.b32.cont [7/16] 0.0, 128
    %1022 = vxpose.xlu0.b32.cont [8/16] 0.0, 128
    %1023 = vxpose.xlu0.b32.cont [9/16] 0.0, 128
    %1024 = vxpose.xlu0.b32.cont [10/16] 0.0, 128
    %1025 = vxpose.xlu0.b32.cont [11/16] 0.0, 128
    %1026 = vxpose.xlu0.b32.cont [12/16] 0.0, 128
    %1027 = vxpose.xlu0.b32.cont [13/16] 0.0, 128
    %1028 = vxpose.xlu0.b32.cont [14/16] 0.0, 128
    %1029 = vxpose.xlu0.b32.cont [15/16] 0.0, 128
    %1030 = vxpose.xlu0.b32.end [16/16] 0.0, 128
    %v1031 = vpop.trf.xlu0
    %v1032 = vpop.trf.xlu0
    %v1033 = vpop.trf.xlu0
    %v1034 = vpop.trf.xlu0
    %v1035 = vpop.trf.xlu0
    %v1036 = vpop.trf.xlu0
    %v1037 = vpop.trf.xlu0
    %v1038 = vpop.trf.xlu0
    %v1039 = vpop.trf.xlu0
    %v1040 = vpop.trf.xlu0
    %v1041 = vpop.trf.xlu0
    %v1042 = vpop.trf.xlu0
    %v1043 = vpop.trf.xlu0
    %v1044 = vpop.trf.xlu0
    %v1045 = vpop.trf.xlu0
    %v1046 = vpop.trf.xlu0
    %vm1047 = vcmask 123904
    %1048 = vst.msk [vmem:[#allocation2] sm:$0x3] %vm1047, %v1031
    // Predicated region
    $region78: #{tpu_custom_call.1} parent=1 // pred_check
      _
    $region79: #{tpu_custom_call.1} parent=1 // pred_check_branch
      %1050 = sbr.rel (0) target = $region81
    $region80: #{tpu_custom_call.1} parent=1 // pred_region
      %s1052 = ssub.s32 32, 32
      %1053 = vsyncadd [#allocation3], %s1052
      %s1055 = sshll.u32 [#allocation2], 4
      %s1056 = int_to_ptr.vmem [resolvable:$true] %s1055
      %1058 = dma.vmem_to_hbm [thread:$0]  %s1056, 32, %s19, [#allocation3]
    $region81: #{tpu_custom_call.1} parent=1 // pred_fallthru
      _
    // Predicated region
    $region82: #{tpu_custom_call.1} parent=1 // pred_check
      _
    $region83: #{tpu_custom_call.1} parent=1 // pred_check_branch
      %1060 = sbr.rel (0) target = $region85
    $region84: #{tpu_custom_call.1} parent=1 // pred_region
      %1061 = dma.done [#allocation3], 32
    $region85: #{tpu_custom_call.1} parent=1 // pred_fallthru
      _
    %1062 = vsyncpa [#allocation3], 1

// kernel: tpu_custom_call.1
$region0: #{tpu_custom_call.1}
  #allocation0 [shape = 'u32[]', space=smem, size = 0x4, offset = 0x4, fixed_abs, tag = 'smem constant byte address 0x4 - core index']
  #allocation1 [shape = 'u32[144,128]{1,0:T(1,128)}', space=vmem, size = 0x12000, scoped, tag = 'internal scratch']
  %s0 = inlined_call_operand.vmem [shape: bf16[16,6], index: 0, kind: input, shape index: {}]
  %s1 = inlined_call_operand.vmem [shape: s32[16,3], index: 1, kind: input, shape index: {}]
  %s2 = inlined_call_operand.vmem [shape: bf16[6,16], index: 2, kind: input, shape index: {}]
  %s3 = inlined_call_operand.vmem [shape: f32[1,16], index: 3, kind: input, shape index: {}]
  %s4 = inlined_call_operand.vmem [shape: bf16[16,96], index: 4, kind: input, shape index: {}]
  %s5 = inlined_call_operand.vmem [shape: bf16[60,96], index: 5, kind: input, shape index: {}]
  %s6 = inlined_call_operand.vmem [shape: f32[1,96], index: 6, kind: input, shape index: {}]
  %s7 = inlined_call_operand.vmem [shape: bf16[96,48], index: 7, kind: input, shape index: {}]
  %s8 = inlined_call_operand.vmem [shape: f32[1,48], index: 8, kind: input, shape index: {}]
  %s9 = inlined_call_operand.vmem [shape: bf16[16,6], index: 9, kind: input, shape index: {}]
  %s10 = inlined_call_operand.vmem [shape: bf16[60,6], index: 10, kind: input, shape index: {}]
  %s11 = inlined_call_operand.vmem [shape: f32[1,6], index: 11, kind: input, shape index: {}]
  %s12 = inlined_call_operand.vmem [shape: f32[6,2], index: 12, kind: input, shape index: {}]
  %s13 = inlined_call_operand.vmem [shape: f32[6,96], index: 13, kind: input, shape index: {}]
  %s14 = inlined_call_operand.vmem [shape: f32[2,96], index: 14, kind: input, shape index: {}]
  %s15 = inlined_call_operand.vmem [shape: bf16[96,16], index: 15, kind: input, shape index: {}]
  %s16 = inlined_call_operand.vmem [shape: f32[1,16], index: 16, kind: input, shape index: {}]
  %s17 = inlined_call_operand.vmem [shape: bf16[16,2], index: 17, kind: input, shape index: {}]
  %s18 = inlined_call_operand.vmem [shape: f32[1,2], index: 18, kind: input, shape index: {}]
  %s19 = inlined_call_operand.vmem [shape: f32[16,2], index: 19, kind: output, shape index: {}]
  %s20 = sld [smem:[#allocation0]]
  $region86: #{tpu_custom_call.1} parent=0
    _
  %s22 = ssub.s32 1, %s20
  %s23 = scalar_select 0, %s22, %s20
  // Predicated region
  $region2: #{tpu_custom_call.1} parent=0 // pred_check
    _
  $region3: #{tpu_custom_call.1} parent=0 // pred_check_branch
    %25 = sbr.rel (0) target = $region5
  $region4: #{tpu_custom_call.1} parent=0 // pred_region
    _
  $region5: #{tpu_custom_call.1} parent=0 // pred_fallthru
    _
  // Predicated region
  $region6: #{tpu_custom_call.1} parent=0 // pred_check
    _
  $region7: #{tpu_custom_call.1} parent=0 // pred_check_branch
    %27 = sbr.rel (0) target = $region9
  $region8: #{tpu_custom_call.1} parent=0 // pred_region
    _
  $region9: #{tpu_custom_call.1} parent=0 // pred_fallthru
    _
  // Predicated region
  $region10: #{tpu_custom_call.1} parent=0 // pred_check
    _
  $region11: #{tpu_custom_call.1} parent=0 // pred_check_branch
    %29 = sbr.rel (0) target = $region13
  $region12: #{tpu_custom_call.1} parent=0 // pred_region
    _
  $region13: #{tpu_custom_call.1} parent=0 // pred_fallthru
    _
  // Predicated region
  $region14: #{tpu_custom_call.1} parent=0 // pred_check
    _
  $region15: #{tpu_custom_call.1} parent=0 // pred_check_branch
    %31 = sbr.rel (0) target = $region17
  $region16: #{tpu_custom_call.1} parent=0 // pred_region
    _
  $region17: #{tpu_custom_call.1} parent=0 // pred_fallthru
    _
  // Predicated region
  $region18: #{tpu_custom_call.1} parent=0 // pred_check
    _
  $region19: #{tpu_custom_call.1} parent=0 // pred_check_branch
    %33 = sbr.rel (0) target = $region21
  $region20: #{tpu_custom_call.1} parent=0 // pred_region
    _
  $region21: #{tpu_custom_call.1} parent=0 // pred_fallthru
    _
  // Predicated region
  $region22: #{tpu_custom_call.1} parent=0 // pred_check
    _
  $region23: #{tpu_custom_call.1} parent=0 // pred_check_branch
    %35 = sbr.rel (0) target = $region25
  $region24: #{tpu_custom_call.1} parent=0 // pred_region
    _
  $region25: #{tpu_custom_call.1} parent=0 // pred_fallthru
    _
  // Predicated region
  $region26: #{tpu_custom_call.1} parent=0 // pred_check
    _
  $region27: #{tpu_custom_call.1} parent=0 // pred_check_branch
    %37 = sbr.rel (0) target = $region29
  $region28: #{tpu_custom_call.1} parent=0 // pred_region
    _
  $region29: #{tpu_custom_call.1} parent=0 // pred_fallthru
    _
  // Predicated region
  $region30: #{tpu_custom_call.1} parent=0 // pred_check
    _
  $region31: #{tpu_custom_call.1} parent=0 // pred_check_branch
    %39 = sbr.rel (0) target = $region33
  $region32: #{tpu_custom_call.1} parent=0 // pred_region
    _
  $region33: #{tpu_custom_call.1} parent=0 // pred_fallthru
    _
  // Predicated region
  $region34: #{tpu_custom_call.1} parent=0 // pred_check
    _
  $region35: #{tpu_custom_call.1} parent=0 // pred_check_branch
    %41 = sbr.rel (0) target = $region37
  $region36: #{tpu_custom_call.1} parent=0 // pred_region
    _
  $region37: #{tpu_custom_call.1} parent=0 // pred_fallthru
    _
  // Predicated region
  $region38: #{tpu_custom_call.1} parent=0 // pred_check
    _
  $region39: #{tpu_custom_call.1} parent=0 // pred_check_branch
    %43 = sbr.rel (0) target = $region41
  $region40: #{tpu_custom_call.1} parent=0 // pred_region
    _
  $region41: #{tpu_custom_call.1} parent=0 // pred_fallthru
    _
  // Predicated region
  $region42: #{tpu_custom_call.1} parent=0 // pred_check
    _
  $region43: #{tpu_custom_call.1} parent=0 // pred_check_branch
    %45 = sbr.rel (0) target = $region45
  $region44: #{tpu_custom_call.1} parent=0 // pred_region
    _
  $region45: #{tpu_custom_call.1} parent=0 // pred_fallthru
    _
  // Predicated region
  $region46: #{tpu_custom_call.1} parent=0 // pred_check
    _
  $region47: #{tpu_custom_call.1} parent=0 // pred_check_branch
    %47 = sbr.rel (0) target = $region49
  $region48: #{tpu_custom_call.1} parent=0 // pred_region
    _
  $region49: #{tpu_custom_call.1} parent=0 // pred_fallthru
    _
  // Predicated region
  $region50: #{tpu_custom_call.1} parent=0 // pred_check
    _
  $region51: #{tpu_custom_call.1} parent=0 // pred_check_branch
    %49 = sbr.rel (0) target = $region53
  $region52: #{tpu_custom_call.1} parent=0 // pred_region
    _
  $region53: #{tpu_custom_call.1} parent=0 // pred_fallthru
    _
  // Predicated region
  $region54: #{tpu_custom_call.1} parent=0 // pred_check
    _
  $region55: #{tpu_custom_call.1} parent=0 // pred_check_branch
    %51 = sbr.rel (0) target = $region57
  $region56: #{tpu_custom_call.1} parent=0 // pred_region
    _
  $region57: #{tpu_custom_call.1} parent=0 // pred_fallthru
    _
  // Predicated region
  $region58: #{tpu_custom_call.1} parent=0 // pred_check
    _
  $region59: #{tpu_custom_call.1} parent=0 // pred_check_branch
    %53 = sbr.rel (0) target = $region61
  $region60: #{tpu_custom_call.1} parent=0 // pred_region
    _
  $region61: #{tpu_custom_call.1} parent=0 // pred_fallthru
    _
  // Predicated region
  $region62: #{tpu_custom_call.1} parent=0 // pred_check
    _
  $region63: #{tpu_custom_call.1} parent=0 // pred_check_branch
    %55 = sbr.rel (0) target = $region65
  $region64: #{tpu_custom_call.1} parent=0 // pred_region
    _
  $region65: #{tpu_custom_call.1} parent=0 // pred_fallthru
    _
  // Predicated region
  $region66: #{tpu_custom_call.1} parent=0 // pred_check
    _
  $region67: #{tpu_custom_call.1} parent=0 // pred_check_branch
    %57 = sbr.rel (0) target = $region69
  $region68: #{tpu_custom_call.1} parent=0 // pred_region
    _
  $region69: #{tpu_custom_call.1} parent=0 // pred_fallthru
    _
  // Predicated region
  $region70: #{tpu_custom_call.1} parent=0 // pred_check
    _
  $region71: #{tpu_custom_call.1} parent=0 // pred_check_branch
    %59 = sbr.rel (0) target = $region73
  $region72: #{tpu_custom_call.1} parent=0 // pred_region
    _
  $region73: #{tpu_custom_call.1} parent=0 // pred_fallthru
    _
  // Predicated region
  $region74: #{tpu_custom_call.1} parent=0 // pred_check
    _
  $region75: #{tpu_custom_call.1} parent=0 // pred_check_branch
    %61 = sbr.rel (0) target = $region77
  $region76: #{tpu_custom_call.1} parent=0 // pred_region
    _
  $region77: #{tpu_custom_call.1} parent=0 // pred_fallthru
    _
  %v63 = vld [vmem:[%s1] sm:$0xff]
  %v64 = vld [vmem:[%s1 + $0x8] sm:$0xff]
  %v65 = vlaneseq
  %v66 = vand.u32 %v65, 127
  %67 = vset.pattern.permute.xlu0 0
  %68 = vperm.xlu0 %67, %v63
  %v69 = vpop.permute.xlu0 %68
  %70 = vset.pattern.permute.xlu0 0
  %71 = vperm.xlu0 %70, %v64
  %v72 = vpop.permute.xlu0 %71
  %vm73 = vcmp.eq.s32.totalorder %v66, %v69
  %vm74 = vcmp.eq.s32.totalorder %v66, %v72
  %v75 = vsel %vm73, 1, 0
  %v76 = vsel %vm74, 1, 0
  %v77 = vcvt.s32.f32 %v75
  %v78 = vcvt.s32.f32 %v76
  %v79 = vpack.c.bf16 %v78, %v77
  %v80 = vadd.bf16 %v79, 0
  %v81 = vadd.s32 %v63, 10
  %v82 = vadd.s32 %v64, 10
  %83 = vset.pattern.permute.xlu0 1
  %84 = vperm.xlu0 %83, %v81
  %v85 = vpop.permute.xlu0 %84
  %86 = vset.pattern.permute.xlu0 1
  %87 = vperm.xlu0 %86, %v82
  %v88 = vpop.permute.xlu0 %87
  %vm89 = vcmp.eq.s32.totalorder %v66, %v85
  %vm90 = vcmp.eq.s32.totalorder %v66, %v88
  %v91 = vsel %vm89, 1, 0
  %v92 = vsel %vm90, 1, 0
  %v93 = vcvt.s32.f32 %v91
  %v94 = vcvt.s32.f32 %v92
  %v95 = vpack.c.bf16 %v94, %v93
  %v96 = vadd.bf16 %v80, %v95
  %v97 = vadd.s32 %v63, 30
  %v98 = vadd.s32 %v64, 30
  %99 = vset.pattern.permute.xlu0 2
  %100 = vperm.xlu0 %99, %v97
  %v101 = vpop.permute.xlu0 %100
  %102 = vset.pattern.permute.xlu0 2
  %103 = vperm.xlu0 %102, %v98
  %v104 = vpop.permute.xlu0 %103
  %vm105 = vcmp.eq.s32.totalorder %v66, %v101
  %vm106 = vcmp.eq.s32.totalorder %v66, %v104
  %v107 = vsel %vm105, 1, 0
  %v108 = vsel %vm106, 1, 0
  %v109 = vcvt.s32.f32 %v107
  %v110 = vcvt.s32.f32 %v108
  %v111 = vpack.c.bf16 %v110, %v109
  %v112 = vadd.bf16 %v96, %v111
  %v113 = vld [vmem:[%s0] sm:$0xf]
  %v114 = vld [vmem:[%s0 + $0x4] sm:$0xf]
  %v115 = vld [vmem:[%s2] sm:$0x7]
  %v116 = vld [vmem:[%s3] sm:$0x1]
  %v118 = vlaneseq
  %v119 = vshrl.u32 %v118, 7
  %v120 = vsub.s32 0, %v119
  %v121 = vrot.slane %v116, %v120
  %v125 = vunpack.c.l.b16 %v113
  %v126 = vunpack.c.l.b16 %v114
  %v127 = vpack.c.b16 %v126, %v125
  %vm128 = vcmask 48128
  %v130 = vsel %vm128, %v127, 0
  %vm132 = vcmask 1042432
  %v134 = vsel %vm132, %v115, 0
  %136 = vmatprep.subr.bf16.mxu0 0
  %137 = vmatpush1.bf16.msra.mxu0 0
  %138 = vmatprep.subr.bf16.mxu0 0
  %139 = vmatpush1.bf16.msra.mxu0 0
  %140 = vmatprep.subr.bf16.mxu0 0
  %141 = vmatpush1.bf16.msra.mxu0 0
  %142 = vmatprep.subr.bf16.mxu0 0
  %143 = vmatpush1.bf16.msra.mxu0 0
  %144 = vmatprep.subr.bf16.mxu0 0
  %145 = vmatpush1.bf16.msra.mxu0 0
  %146 = vmatprep.subr.bf16.mxu0 0
  %147 = vmatpush1.bf16.msra.mxu0 0
  %148 = vmatprep.subr.bf16.mxu0 0
  %149 = vmatpush1.bf16.msra.mxu0 0
  %150 = vmatprep.subr.bf16.mxu0 0
  %151 = vmatpush1.bf16.msra.mxu0 %v134
  %152 = vmatprep.subr.bf16.mxu0 0
  %153 = vmatpush2.bf16.msra.mxu0 0
  %154 = vmatprep.subr.bf16.mxu0 0
  %155 = vmatpush2.bf16.msra.mxu0 0
  %156 = vmatprep.subr.bf16.mxu0 0
  %157 = vmatpush2.bf16.msra.mxu0 0
  %158 = vmatprep.subr.bf16.mxu0 0
  %159 = vmatpush2.bf16.msra.mxu0 0
  %160 = vmatprep.subr.bf16.mxu0 0
  %161 = vmatpush2.bf16.msra.mxu0 0
  %162 = vmatprep.subr.bf16.mxu0 0
  %163 = vmatpush2.bf16.msra.mxu0 0
  %164 = vmatprep.subr.bf16.mxu0 0
  %165 = vmatpush2.bf16.msra.mxu0 0
  %166 = vmatprep.subr.bf16.mxu0 0
  %167 = vmatpush2.bf16.msra.mxu0 0
  %168 = vmatprep.mubr.bf16.mxu0 0
  %169 = vmatmul.mubr.bf16.gmra.mxu0 %v130
  %v170 = vpop.f32.mrf.mxu0
  %v171 = vadd.f32 %v121, %v170
  %v172 = vpop.f32.mrf.mxu0
  %v173 = vpop.f32.mrf.mxu0
  %v174 = vadd.f32 %v121, %v173
  %v175 = vpop.f32.mrf.mxu0
  %176 = vdwg.mxu0
  %v177 = vpack.c.bf16 %v174, %v171
  %v178 = vld [vmem:[%s4] sm:$0xf]
  %v179 = vld [vmem:[%s4 + $0x4] sm:$0xf]
  %v180 = vld [vmem:[%s5] sm:$0xf]
  %v181 = vld [vmem:[%s5 + $0x4] sm:$0xf]
  %v182 = vld [vmem:[%s5 + $0x8] sm:$0xf]
  %v183 = vld [vmem:[%s5 + $0xc] sm:$0xf]
  %v184 = vld [vmem:[%s5 + $0x10] sm:$0xf]
  %v185 = vld [vmem:[%s5 + $0x14] sm:$0xf]
  %v186 = vld [vmem:[%s5 + $0x18] sm:$0xf]
  %v187 = vld [vmem:[%s5 + $0x1c] sm:$0x3]
  %v196 = vunpack.c.l.b16 %v180
  %v197 = vunpack.c.l.b16 %v181
  %v198 = vunpack.c.l.b16 %v182
  %v199 = vunpack.c.l.b16 %v183
  %v200 = vunpack.c.l.b16 %v184
  %v201 = vunpack.c.l.b16 %v185
  %v202 = vunpack.c.l.b16 %v186
  %v203 = vunpack.c.l.b16 %v187
  %v204 = vpack.c.b16 %v197, %v196
  %v205 = vpack.c.b16 %v199, %v198
  %v206 = vpack.c.b16 %v201, %v200
  %v207 = vpack.c.b16 %v203, %v202
  %vm211 = vcmask 490496
  %v213 = vsel %vm211, %v112, 0
  %vm215 = vcmask 1045504
  %v217 = vsel %vm215, %v207, 0
  %219 = vmatprep.subr.bf16.mxu0 0
  %220 = vmatpush1.bf16.msra.mxu0 0
  %221 = vmatprep.subr.bf16.mxu0 0
  %222 = vmatpush1.bf16.msra.mxu0 0
  %223 = vmatprep.subr.bf16.mxu0 0
  %224 = vmatpush1.bf16.msra.mxu0 0
  %225 = vmatprep.subr.bf16.mxu0 0
  %226 = vmatpush1.bf16.msra.mxu0 0
  %227 = vmatprep.subr.bf16.mxu0 0
  %228 = vmatpush1.bf16.msra.mxu0 %v217
  %229 = vmatprep.subr.bf16.mxu0 0
  %230 = vmatpush1.bf16.msra.mxu0 %v206
  %231 = vmatprep.subr.bf16.mxu0 0
  %232 = vmatpush1.bf16.msra.mxu0 %v205
  %233 = vmatprep.subr.bf16.mxu0 0
  %234 = vmatpush1.bf16.msra.mxu0 %v204
  %235 = vmatprep.subr.bf16.mxu0 0
  %236 = vmatpush2.bf16.msra.mxu0 0
  %237 = vmatprep.subr.bf16.mxu0 0
  %238 = vmatpush2.bf16.msra.mxu0 0
  %239 = vmatprep.subr.bf16.mxu0 0
  %240 = vmatpush2.bf16.msra.mxu0 0
  %241 = vmatprep.subr.bf16.mxu0 0
  %242 = vmatpush2.bf16.msra.mxu0 0
  %243 = vmatprep.subr.bf16.mxu0 0
  %244 = vmatpush2.bf16.msra.mxu0 0
  %245 = vmatprep.subr.bf16.mxu0 0
  %246 = vmatpush2.bf16.msra.mxu0 0
  %247 = vmatprep.subr.bf16.mxu0 0
  %248 = vmatpush2.bf16.msra.mxu0 0
  %249 = vmatprep.subr.bf16.mxu0 0
  %250 = vmatpush2.bf16.msra.mxu0 0
  %251 = vmatprep.mubr.bf16.mxu0 0
  %252 = vmatmul.mubr.bf16.gmra.mxu0 %v213
  %v253 = vpop.f32.mrf.mxu0
  %v254 = vadd.f32 0.0, %v253
  %v255 = vpop.f32.mrf.mxu0
  %v256 = vpop.f32.mrf.mxu0
  %v257 = vadd.f32 0.0, %v256
  %v258 = vpop.f32.mrf.mxu0
  %259 = vdwg.mxu0
  %v262 = vunpack.c.l.b16 %v178
  %v263 = vunpack.c.l.b16 %v179
  %v264 = vpack.c.b16 %v263, %v262
  %vm266 = vcmask 130048
  %v268 = vsel %vm266, %v177, 0
  %270 = vmatprep.subr.bf16.mxu0 0
  %271 = vmatpush1.bf16.msra.mxu0 0
  %272 = vmatprep.subr.bf16.mxu0 0
  %273 = vmatpush1.bf16.msra.mxu0 0
  %274 = vmatprep.subr.bf16.mxu0 0
  %275 = vmatpush1.bf16.msra.mxu0 0
  %276 = vmatprep.subr.bf16.mxu0 0
  %277 = vmatpush1.bf16.msra.mxu0 0
  %278 = vmatprep.subr.bf16.mxu0 0
  %279 = vmatpush1.bf16.msra.mxu0 0
  %280 = vmatprep.subr.bf16.mxu0 0
  %281 = vmatpush1.bf16.msra.mxu0 0
  %282 = vmatprep.subr.bf16.mxu0 0
  %283 = vmatpush1.bf16.msra.mxu0 0
  %284 = vmatprep.subr.bf16.mxu0 0
  %285 = vmatpush1.bf16.msra.mxu0 %v264
  %286 = vmatprep.subr.bf16.mxu0 0
  %287 = vmatpush2.bf16.msra.mxu0 0
  %288 = vmatprep.subr.bf16.mxu0 0
  %289 = vmatpush2.bf16.msra.mxu0 0
  %290 = vmatprep.subr.bf16.mxu0 0
  %291 = vmatpush2.bf16.msra.mxu0 0
  %292 = vmatprep.subr.bf16.mxu0 0
  %293 = vmatpush2.bf16.msra.mxu0 0
  %294 = vmatprep.subr.bf16.mxu0 0
  %295 = vmatpush2.bf16.msra.mxu0 0
  %296 = vmatprep.subr.bf16.mxu0 0
  %297 = vmatpush2.bf16.msra.mxu0 0
  %298 = vmatprep.subr.bf16.mxu0 0
  %299 = vmatpush2.bf16.msra.mxu0 0
  %300 = vmatprep.subr.bf16.mxu0 0
  %301 = vmatpush2.bf16.msra.mxu0 0
  %302 = vmatprep.mubr.bf16.mxu0 0
  %303 = vmatmul.mubr.bf16.gmra.mxu0 %v268
  %v304 = vpop.f32.mrf.mxu0
  %v305 = vadd.f32 %v254, %v304
  %v306 = vpop.f32.mrf.mxu0
  %v307 = vpop.f32.mrf.mxu0
  %v308 = vadd.f32 %v257, %v307
  %v309 = vpop.f32.mrf.mxu0
  %310 = vdwg.mxu0
  %v311 = vld [vmem:[%s6] sm:$0x1]
  %v313 = vlaneseq
  %v314 = vshrl.u32 %v313, 7
  %v315 = vsub.s32 0, %v314
  %v316 = vrot.slane %v311, %v315
  %v318 = vadd.f32 %v305, %v316
  %v319 = vadd.f32 %v308, %v316
  %v320 = vmax.f32 %v318, 0.0
  %v321 = vmax.f32 %v319, 0.0
  %v322 = vpack.c.bf16 %v321, %v320
  %v323 = vld [vmem:[%s7] sm:$0xf]
  %v324 = vld [vmem:[%s7 + $0x4] sm:$0xf]
  %v325 = vld [vmem:[%s7 + $0x8] sm:$0xf]
  %v326 = vld [vmem:[%s7 + $0xc] sm:$0xf]
  %v327 = vld [vmem:[%s7 + $0x10] sm:$0xf]
  %v328 = vld [vmem:[%s7 + $0x14] sm:$0xf]
  %v329 = vld [vmem:[%s7 + $0x18] sm:$0xf]
  %v330 = vld [vmem:[%s7 + $0x1c] sm:$0xf]
  %v331 = vld [vmem:[%s7 + $0x20] sm:$0xf]
  %v332 = vld [vmem:[%s7 + $0x24] sm:$0xf]
  %v333 = vld [vmem:[%s7 + $0x28] sm:$0xf]
  %v334 = vld [vmem:[%s7 + $0x2c] sm:$0xf]
  %v335 = vld [vmem:[%s8] sm:$0x1]
  %v337 = vlaneseq
  %v338 = vshrl.u32 %v337, 7
  %v339 = vsub.s32 0, %v338
  %v340 = vrot.slane %v335, %v339
  %v354 = vunpack.c.l.b16 %v323
  %v355 = vunpack.c.l.b16 %v324
  %v356 = vunpack.c.l.b16 %v325
  %v357 = vunpack.c.l.b16 %v326
  %v358 = vunpack.c.l.b16 %v327
  %v359 = vunpack.c.l.b16 %v328
  %v360 = vunpack.c.l.b16 %v329
  %v361 = vunpack.c.l.b16 %v330
  %v362 = vunpack.c.l.b16 %v331
  %v363 = vunpack.c.l.b16 %v332
  %v364 = vunpack.c.l.b16 %v333
  %v365 = vunpack.c.l.b16 %v334
  %v366 = vpack.c.b16 %v355, %v354
  %v367 = vpack.c.b16 %v357, %v356
  %v368 = vpack.c.b16 %v359, %v358
  %v369 = vpack.c.b16 %v361, %v360
  %v370 = vpack.c.b16 %v363, %v362
  %v371 = vpack.c.b16 %v365, %v364
  %vm378 = vcmask 785408
  %v380 = vsel %vm378, %v322, 0
  %382 = vmatprep.subr.bf16.mxu0 0
  %383 = vmatpush1.bf16.msra.mxu0 0
  %384 = vmatprep.subr.bf16.mxu0 0
  %385 = vmatpush1.bf16.msra.mxu0 0
  %386 = vmatprep.subr.bf16.mxu0 0
  %387 = vmatpush1.bf16.msra.mxu0 %v371
  %388 = vmatprep.subr.bf16.mxu0 0
  %389 = vmatpush1.bf16.msra.mxu0 %v370
  %390 = vmatprep.subr.bf16.mxu0 0
  %391 = vmatpush1.bf16.msra.mxu0 %v369
  %392 = vmatprep.subr.bf16.mxu0 0
  %393 = vmatpush1.bf16.msra.mxu0 %v368
  %394 = vmatprep.subr.bf16.mxu0 0
  %395 = vmatpush1.bf16.msra.mxu0 %v367
  %396 = vmatprep.subr.bf16.mxu0 0
  %397 = vmatpush1.bf16.msra.mxu0 %v366
  %398 = vmatprep.subr.bf16.mxu0 0
  %399 = vmatpush2.bf16.msra.mxu0 0
  %400 = vmatprep.subr.bf16.mxu0 0
  %401 = vmatpush2.bf16.msra.mxu0 0
  %402 = vmatprep.subr.bf16.mxu0 0
  %403 = vmatpush2.bf16.msra.mxu0 0
  %404 = vmatprep.subr.bf16.mxu0 0
  %405 = vmatpush2.bf16.msra.mxu0 0
  %406 = vmatprep.subr.bf16.mxu0 0
  %407 = vmatpush2.bf16.msra.mxu0 0
  %408 = vmatprep.subr.bf16.mxu0 0
  %409 = vmatpush2.bf16.msra.mxu0 0
  %410 = vmatprep.subr.bf16.mxu0 0
  %411 = vmatpush2.bf16.msra.mxu0 0
  %412 = vmatprep.subr.bf16.mxu0 0
  %413 = vmatpush2.bf16.msra.mxu0 0
  %414 = vmatprep.mubr.bf16.mxu0 0
  %415 = vmatmul.mubr.bf16.gmra.mxu0 %v380
  %v416 = vpop.f32.mrf.mxu0
  %v417 = vadd.f32 %v340, %v416
  %v418 = vpop.f32.mrf.mxu0
  %v419 = vpop.f32.mrf.mxu0
  %v420 = vadd.f32 %v340, %v419
  %v421 = vpop.f32.mrf.mxu0
  %422 = vdwg.mxu0
  %v423 = vmax.f32 %v417, 0.0
  %v424 = vmax.f32 %v420, 0.0
  %v425 = vld [vmem:[%s9] sm:$0xf]
  %v426 = vld [vmem:[%s9 + $0x4] sm:$0xf]
  %v427 = vld [vmem:[%s10] sm:$0xf]
  %v428 = vld [vmem:[%s10 + $0x4] sm:$0xf]
  %v429 = vld [vmem:[%s10 + $0x8] sm:$0xf]
  %v430 = vld [vmem:[%s10 + $0xc] sm:$0xf]
  %v431 = vld [vmem:[%s10 + $0x10] sm:$0xf]
  %v432 = vld [vmem:[%s10 + $0x14] sm:$0xf]
  %v433 = vld [vmem:[%s10 + $0x18] sm:$0xf]
  %v434 = vld [vmem:[%s10 + $0x1c] sm:$0x3]
  %v443 = vunpack.c.l.b16 %v427
  %v444 = vunpack.c.l.b16 %v428
  %v445 = vunpack.c.l.b16 %v429
  %v446 = vunpack.c.l.b16 %v430
  %v447 = vunpack.c.l.b16 %v431
  %v448 = vunpack.c.l.b16 %v432
  %v449 = vunpack.c.l.b16 %v433
  %v450 = vunpack.c.l.b16 %v434
  %v451 = vpack.c.b16 %v444, %v443
  %v452 = vpack.c.b16 %v446, %v445
  %v453 = vpack.c.b16 %v448, %v447
  %v454 = vpack.c.b16 %v450, %v449
  %v459 = vsel %vm215, %v454, 0
  %461 = vmatprep.subr.bf16.mxu0 0
  %462 = vmatpush1.bf16.msra.mxu0 0
  %463 = vmatprep.subr.bf16.mxu0 0
  %464 = vmatpush1.bf16.msra.mxu0 0
  %465 = vmatprep.subr.bf16.mxu0 0
  %466 = vmatpush1.bf16.msra.mxu0 0
  %467 = vmatprep.subr.bf16.mxu0 0
  %468 = vmatpush1.bf16.msra.mxu0 0
  %469 = vmatprep.subr.bf16.mxu0 0
  %470 = vmatpush1.bf16.msra.mxu0 %v459
  %471 = vmatprep.subr.bf16.mxu0 0
  %472 = vmatpush1.bf16.msra.mxu0 %v453
  %473 = vmatprep.subr.bf16.mxu0 0
  %474 = vmatpush1.bf16.msra.mxu0 %v452
  %475 = vmatprep.subr.bf16.mxu0 0
  %476 = vmatpush1.bf16.msra.mxu0 %v451
  %477 = vmatprep.subr.bf16.mxu0 0
  %478 = vmatpush2.bf16.msra.mxu0 0
  %479 = vmatprep.subr.bf16.mxu0 0
  %480 = vmatpush2.bf16.msra.mxu0 0
  %481 = vmatprep.subr.bf16.mxu0 0
  %482 = vmatpush2.bf16.msra.mxu0 0
  %483 = vmatprep.subr.bf16.mxu0 0
  %484 = vmatpush2.bf16.msra.mxu0 0
  %485 = vmatprep.subr.bf16.mxu0 0
  %486 = vmatpush2.bf16.msra.mxu0 0
  %487 = vmatprep.subr.bf16.mxu0 0
  %488 = vmatpush2.bf16.msra.mxu0 0
  %489 = vmatprep.subr.bf16.mxu0 0
  %490 = vmatpush2.bf16.msra.mxu0 0
  %491 = vmatprep.subr.bf16.mxu0 0
  %492 = vmatpush2.bf16.msra.mxu0 0
  %493 = vmatprep.mubr.bf16.mxu0 0
  %494 = vmatmul.mubr.bf16.gmra.mxu0 %v213
  %v495 = vpop.f32.mrf.mxu0
  %v496 = vadd.f32 0.0, %v495
  %v497 = vpop.f32.mrf.mxu0
  %v498 = vpop.f32.mrf.mxu0
  %v499 = vadd.f32 0.0, %v498
  %v500 = vpop.f32.mrf.mxu0
  %501 = vdwg.mxu0
  %v504 = vunpack.c.l.b16 %v425
  %v505 = vunpack.c.l.b16 %v426
  %v506 = vpack.c.b16 %v505, %v504
  %508 = vmatprep.subr.bf16.mxu0 0
  %509 = vmatpush1.bf16.msra.mxu0 0
  %510 = vmatprep.subr.bf16.mxu0 0
  %511 = vmatpush1.bf16.msra.mxu0 0
  %512 = vmatprep.subr.bf16.mxu0 0
  %513 = vmatpush1.bf16.msra.mxu0 0
  %514 = vmatprep.subr.bf16.mxu0 0
  %515 = vmatpush1.bf16.msra.mxu0 0
  %516 = vmatprep.subr.bf16.mxu0 0
  %517 = vmatpush1.bf16.msra.mxu0 0
  %518 = vmatprep.subr.bf16.mxu0 0
  %519 = vmatpush1.bf16.msra.mxu0 0
  %520 = vmatprep.subr.bf16.mxu0 0
  %521 = vmatpush1.bf16.msra.mxu0 0
  %522 = vmatprep.subr.bf16.mxu0 0
  %523 = vmatpush1.bf16.msra.mxu0 %v506
  %524 = vmatprep.subr.bf16.mxu0 0
  %525 = vmatpush2.bf16.msra.mxu0 0
  %526 = vmatprep.subr.bf16.mxu0 0
  %527 = vmatpush2.bf16.msra.mxu0 0
  %528 = vmatprep.subr.bf16.mxu0 0
  %529 = vmatpush2.bf16.msra.mxu0 0
  %530 = vmatprep.subr.bf16.mxu0 0
  %531 = vmatpush2.bf16.msra.mxu0 0
  %532 = vmatprep.subr.bf16.mxu0 0
  %533 = vmatpush2.bf16.msra.mxu0 0
  %534 = vmatprep.subr.bf16.mxu0 0
  %535 = vmatpush2.bf16.msra.mxu0 0
  %536 = vmatprep.subr.bf16.mxu0 0
  %537 = vmatpush2.bf16.msra.mxu0 0
  %538 = vmatprep.subr.bf16.mxu0 0
  %539 = vmatpush2.bf16.msra.mxu0 0
  %540 = vmatprep.mubr.bf16.mxu0 0
  %541 = vmatmul.mubr.bf16.gmra.mxu0 %v268
  %v542 = vpop.f32.mrf.mxu0
  %v543 = vadd.f32 %v496, %v542
  %v544 = vpop.f32.mrf.mxu0
  %v545 = vpop.f32.mrf.mxu0
  %v546 = vadd.f32 %v499, %v545
  %v547 = vpop.f32.mrf.mxu0
  %548 = vdwg.mxu0
  %v549 = vld [vmem:[%s11] sm:$0x1]
  %v551 = vlaneseq
  %v552 = vshrl.u32 %v551, 7
  %v553 = vsub.s32 0, %v552
  %v554 = vrot.slane %v549, %v553
  %v556 = vadd.f32 %v543, %v554
  %v557 = vadd.f32 %v546, %v554
  %v558 = vsel %vm128, %v556, -inf
  %559 = vmax.xlane.f32.xlu0 %v558
  %v560 = vpop.xlane.xlu0 %559
  %v561 = vsel %vm128, %v557, -inf
  %562 = vmax.xlane.f32.xlu0 %v561
  %v563 = vpop.xlane.xlu0 %562
  %v564 = vsub.f32 %v556, %v560
  %v565 = vsub.f32 %v557, %v563
  %v566 = vmul.f32 %v564, 1.442695
  %v567 = vpow.pop %v566
  %v568 = vmul.f32 %v565, 1.442695
  %v569 = vpow.pop %v568
  %v570 = vld [vmem:[%s12] sm:$0x3f]
  %v572 = vsel %vm128, %v567, 0
  %v575 = vsel %vm128, %v569, 0
  %v578 = vsel %vm215, %v570, 0
  %580 = vmatprep.subr.mxu0 0.0
  %581 = vmatpush1.msra.mxu0 0.0
  %582 = vmatprep.subr.mxu0 0.0
  %583 = vmatpush1.msra.mxu0 0.0
  %584 = vmatprep.subr.mxu0 0.0
  %585 = vmatpush1.msra.mxu0 0.0
  %586 = vmatprep.subr.mxu0 0.0
  %587 = vmatpush1.msra.mxu0 0.0
  %588 = vmatprep.subr.mxu0 0.0
  %589 = vmatpush1.msra.mxu0 0.0
  %590 = vmatprep.subr.mxu0 0.0
  %591 = vmatpush1.msra.mxu0 0.0
  %592 = vmatprep.subr.mxu0 0.0
  %593 = vmatpush1.msra.mxu0 0.0
  %594 = vmatprep.subr.mxu0 0.0
  %595 = vmatpush1.msra.mxu0 0.0
  %596 = vmatprep.subr.mxu0 0.0
  %597 = vmatpush1.msra.mxu0 0.0
  %598 = vmatprep.subr.mxu0 0.0
  %599 = vmatpush1.msra.mxu0 0.0
  %600 = vmatprep.subr.mxu0 0.0
  %601 = vmatpush1.msra.mxu0 0.0
  %602 = vmatprep.subr.mxu0 0.0
  %603 = vmatpush1.msra.mxu0 0.0
  %604 = vmatprep.subr.mxu0 0.0
  %605 = vmatpush1.msra.mxu0 0.0
  %606 = vmatprep.subr.mxu0 0.0
  %607 = vmatpush1.msra.mxu0 0.0
  %608 = vmatprep.subr.mxu0 0.0
  %609 = vmatpush1.msra.mxu0 0.0
  %610 = vmatprep.subr.mxu0 0.0
  %611 = vmatpush1.msra.mxu0 %v578
  %612 = vmatprep.subr.mxu0 0.0
  %613 = vmatpush2.msra.mxu0 0.0
  %614 = vmatprep.subr.mxu0 0.0
  %615 = vmatpush2.msra.mxu0 0.0
  %616 = vmatprep.subr.mxu0 0.0
  %617 = vmatpush2.msra.mxu0 0.0
  %618 = vmatprep.subr.mxu0 0.0
  %619 = vmatpush2.msra.mxu0 0.0
  %620 = vmatprep.subr.mxu0 0.0
  %621 = vmatpush2.msra.mxu0 0.0
  %622 = vmatprep.subr.mxu0 0.0
  %623 = vmatpush2.msra.mxu0 0.0
  %624 = vmatprep.subr.mxu0 0.0
  %625 = vmatpush2.msra.mxu0 0.0
  %626 = vmatprep.subr.mxu0 0.0
  %627 = vmatpush2.msra.mxu0 0.0
  %628 = vmatprep.subr.mxu0 0.0
  %629 = vmatpush2.msra.mxu0 0.0
  %630 = vmatprep.subr.mxu0 0.0
  %631 = vmatpush2.msra.mxu0 0.0
  %632 = vmatprep.subr.mxu0 0.0
  %633 = vmatpush2.msra.mxu0 0.0
  %634 = vmatprep.subr.mxu0 0.0
  %635 = vmatpush2.msra.mxu0 0.0
  %636 = vmatprep.subr.mxu0 0.0
  %637 = vmatpush2.msra.mxu0 0.0
  %638 = vmatprep.subr.mxu0 0.0
  %639 = vmatpush2.msra.mxu0 0.0
  %640 = vmatprep.subr.mxu0 0.0
  %641 = vmatpush2.msra.mxu0 0.0
  %642 = vmatprep.subr.mxu0 0.0
  %643 = vmatpush2.msra.mxu0 0.0
  %644 = vmatprep.mubr.f32.mxu0 0.0
  %645 = vmatmul.mubr.f32.gmra.mxu0 %v572
  %v646 = vpop.f32.mrf.mxu0
  %v647 = vadd.f32 0.0, %v646
  %v648 = vpop.f32.mrf.mxu0
  %649 = vmatprep.mubr.f32.mxu0 0.0
  %650 = vmatmul.mubr.f32.gmra.mxu0 %v575
  %v651 = vpop.f32.mrf.mxu0
  %v652 = vadd.f32 0.0, %v651
  %v653 = vpop.f32.mrf.mxu0
  %654 = vdwg.mxu0
  %v655 = vrcp.pop %v647
  %v656 = vmul.f32 1.0, %v655
  %v657 = vrcp.pop %v652
  %v658 = vmul.f32 1.0, %v657
  %v659 = vld [vmem:[%s13] sm:$0x3f]
  %v661 = vsel %vm215, %v659, 0
  %663 = vmatprep.subr.mxu0 0.0
  %664 = vmatpush1.msra.mxu0 0.0
  %665 = vmatprep.subr.mxu0 0.0
  %666 = vmatpush1.msra.mxu0 0.0
  %667 = vmatprep.subr.mxu0 0.0
  %668 = vmatpush1.msra.mxu0 0.0
  %669 = vmatprep.subr.mxu0 0.0
  %670 = vmatpush1.msra.mxu0 0.0
  %671 = vmatprep.subr.mxu0 0.0
  %672 = vmatpush1.msra.mxu0 0.0
  %673 = vmatprep.subr.mxu0 0.0
  %674 = vmatpush1.msra.mxu0 0.0
  %675 = vmatprep.subr.mxu0 0.0
  %676 = vmatpush1.msra.mxu0 0.0
  %677 = vmatprep.subr.mxu0 0.0
  %678 = vmatpush1.msra.mxu0 0.0
  %679 = vmatprep.subr.mxu0 0.0
  %680 = vmatpush1.msra.mxu0 0.0
  %681 = vmatprep.subr.mxu0 0.0
  %682 = vmatpush1.msra.mxu0 0.0
  %683 = vmatprep.subr.mxu0 0.0
  %684 = vmatpush1.msra.mxu0 0.0
  %685 = vmatprep.subr.mxu0 0.0
  %686 = vmatpush1.msra.mxu0 0.0
  %687 = vmatprep.subr.mxu0 0.0
  %688 = vmatpush1.msra.mxu0 0.0
  %689 = vmatprep.subr.mxu0 0.0
  %690 = vmatpush1.msra.mxu0 0.0
  %691 = vmatprep.subr.mxu0 0.0
  %692 = vmatpush1.msra.mxu0 0.0
  %693 = vmatprep.subr.mxu0 0.0
  %694 = vmatpush1.msra.mxu0 %v661
  %695 = vmatprep.subr.mxu0 0.0
  %696 = vmatpush2.msra.mxu0 0.0
  %697 = vmatprep.subr.mxu0 0.0
  %698 = vmatpush2.msra.mxu0 0.0
  %699 = vmatprep.subr.mxu0 0.0
  %700 = vmatpush2.msra.mxu0 0.0
  %701 = vmatprep.subr.mxu0 0.0
  %702 = vmatpush2.msra.mxu0 0.0
  %703 = vmatprep.subr.mxu0 0.0
  %704 = vmatpush2.msra.mxu0 0.0
  %705 = vmatprep.subr.mxu0 0.0
  %706 = vmatpush2.msra.mxu0 0.0
  %707 = vmatprep.subr.mxu0 0.0
  %708 = vmatpush2.msra.mxu0 0.0
  %709 = vmatprep.subr.mxu0 0.0
  %710 = vmatpush2.msra.mxu0 0.0
  %711 = vmatprep.subr.mxu0 0.0
  %712 = vmatpush2.msra.mxu0 0.0
  %713 = vmatprep.subr.mxu0 0.0
  %714 = vmatpush2.msra.mxu0 0.0
  %715 = vmatprep.subr.mxu0 0.0
  %716 = vmatpush2.msra.mxu0 0.0
  %717 = vmatprep.subr.mxu0 0.0
  %718 = vmatpush2.msra.mxu0 0.0
  %719 = vmatprep.subr.mxu0 0.0
  %720 = vmatpush2.msra.mxu0 0.0
  %721 = vmatprep.subr.mxu0 0.0
  %722 = vmatpush2.msra.mxu0 0.0
  %723 = vmatprep.subr.mxu0 0.0
  %724 = vmatpush2.msra.mxu0 0.0
  %725 = vmatprep.subr.mxu0 0.0
  %726 = vmatpush2.msra.mxu0 0.0
  %727 = vmatprep.mubr.f32.mxu0 0.0
  %728 = vmatmul.mubr.f32.gmra.mxu0 %v572
  %v729 = vpop.f32.mrf.mxu0
  %v730 = vadd.f32 0.0, %v729
  %v731 = vpop.f32.mrf.mxu0
  %732 = vmatprep.mubr.f32.mxu0 0.0
  %733 = vmatmul.mubr.f32.gmra.mxu0 %v575
  %v734 = vpop.f32.mrf.mxu0
  %v735 = vadd.f32 0.0, %v734
  %v736 = vpop.f32.mrf.mxu0
  %737 = vdwg.mxu0
  %v738 = vld [vmem:[%s14] sm:$0x3]
  %vm739 = vcmask 15360
  %v741 = vsel %vm739, %v656, 0
  %v744 = vsel %vm739, %v658, 0
  %vm746 = vcmask 1041408
  %v748 = vsel %vm746, %v738, 0
  %750 = vmatprep.subr.mxu0 0.0
  %751 = vmatpush1.msra.mxu0 0.0
  %752 = vmatprep.subr.mxu0 0.0
  %753 = vmatpush1.msra.mxu0 0.0
  %754 = vmatprep.subr.mxu0 0.0
  %755 = vmatpush1.msra.mxu0 0.0
  %756 = vmatprep.subr.mxu0 0.0
  %757 = vmatpush1.msra.mxu0 0.0
  %758 = vmatprep.subr.mxu0 0.0
  %759 = vmatpush1.msra.mxu0 0.0
  %760 = vmatprep.subr.mxu0 0.0
  %761 = vmatpush1.msra.mxu0 0.0
  %762 = vmatprep.subr.mxu0 0.0
  %763 = vmatpush1.msra.mxu0 0.0
  %764 = vmatprep.subr.mxu0 0.0
  %765 = vmatpush1.msra.mxu0 0.0
  %766 = vmatprep.subr.mxu0 0.0
  %767 = vmatpush1.msra.mxu0 0.0
  %768 = vmatprep.subr.mxu0 0.0
  %769 = vmatpush1.msra.mxu0 0.0
  %770 = vmatprep.subr.mxu0 0.0
  %771 = vmatpush1.msra.mxu0 0.0
  %772 = vmatprep.subr.mxu0 0.0
  %773 = vmatpush1.msra.mxu0 0.0
  %774 = vmatprep.subr.mxu0 0.0
  %775 = vmatpush1.msra.mxu0 0.0
  %776 = vmatprep.subr.mxu0 0.0
  %777 = vmatpush1.msra.mxu0 0.0
  %778 = vmatprep.subr.mxu0 0.0
  %779 = vmatpush1.msra.mxu0 0.0
  %780 = vmatprep.subr.mxu0 0.0
  %781 = vmatpush1.msra.mxu0 %v748
  %782 = vmatprep.subr.mxu0 0.0
  %783 = vmatpush2.msra.mxu0 0.0
  %784 = vmatprep.subr.mxu0 0.0
  %785 = vmatpush2.msra.mxu0 0.0
  %786 = vmatprep.subr.mxu0 0.0
  %787 = vmatpush2.msra.mxu0 0.0
  %788 = vmatprep.subr.mxu0 0.0
  %789 = vmatpush2.msra.mxu0 0.0
  %790 = vmatprep.subr.mxu0 0.0
  %791 = vmatpush2.msra.mxu0 0.0
  %792 = vmatprep.subr.mxu0 0.0
  %793 = vmatpush2.msra.mxu0 0.0
  %794 = vmatprep.subr.mxu0 0.0
  %795 = vmatpush2.msra.mxu0 0.0
  %796 = vmatprep.subr.mxu0 0.0
  %797 = vmatpush2.msra.mxu0 0.0
  %798 = vmatprep.subr.mxu0 0.0
  %799 = vmatpush2.msra.mxu0 0.0
  %800 = vmatprep.subr.mxu0 0.0
  %801 = vmatpush2.msra.mxu0 0.0
  %802 = vmatprep.subr.mxu0 0.0
  %803 = vmatpush2.msra.mxu0 0.0
  %804 = vmatprep.subr.mxu0 0.0
  %805 = vmatpush2.msra.mxu0 0.0
  %806 = vmatprep.subr.mxu0 0.0
  %807 = vmatpush2.msra.mxu0 0.0
  %808 = vmatprep.subr.mxu0 0.0
  %809 = vmatpush2.msra.mxu0 0.0
  %810 = vmatprep.subr.mxu0 0.0
  %811 = vmatpush2.msra.mxu0 0.0
  %812 = vmatprep.subr.mxu0 0.0
  %813 = vmatpush2.msra.mxu0 0.0
  %814 = vmatprep.mubr.f32.mxu0 0.0
  %815 = vmatmul.mubr.f32.gmra.mxu0 %v741
  %v816 = vpop.f32.mrf.mxu0
  %v817 = vadd.f32 0.0, %v816
  %v818 = vpop.f32.mrf.mxu0
  %819 = vmatprep.mubr.f32.mxu0 0.0
  %820 = vmatmul.mubr.f32.gmra.mxu0 %v744
  %v821 = vpop.f32.mrf.mxu0
  %v822 = vadd.f32 0.0, %v821
  %v823 = vpop.f32.mrf.mxu0
  %824 = vdwg.mxu0
  %v825 = vmul.f32 %v730, %v817
  %v826 = vmul.f32 %v735, %v822
  %829 = vrot.lane.b32.xlu0 %v423, 48
  %v830 = vpop.permute.xlu0 %829
  %831 = vrot.lane.b32.xlu0 %v424, 48
  %v832 = vpop.permute.xlu0 %831
  %vm835 = vcmask 392192
  %v836 = vsel %vm835, %v423, %v830
  %v837 = vsel %vm835, %v424, %v832
  %v838 = vmul.f32 %v825, %v836
  %v839 = vmul.f32 %v826, %v837
  %v840 = vpack.c.bf16 %v839, %v838
  %v841 = vld [vmem:[%s15] sm:$0xf]
  %v842 = vld [vmem:[%s15 + $0x4] sm:$0xf]
  %v843 = vld [vmem:[%s15 + $0x8] sm:$0xf]
  %v844 = vld [vmem:[%s15 + $0xc] sm:$0xf]
  %v845 = vld [vmem:[%s15 + $0x10] sm:$0xf]
  %v846 = vld [vmem:[%s15 + $0x14] sm:$0xf]
  %v847 = vld [vmem:[%s15 + $0x18] sm:$0xf]
  %v848 = vld [vmem:[%s15 + $0x1c] sm:$0xf]
  %v849 = vld [vmem:[%s15 + $0x20] sm:$0xf]
  %v850 = vld [vmem:[%s15 + $0x24] sm:$0xf]
  %v851 = vld [vmem:[%s15 + $0x28] sm:$0xf]
  %v852 = vld [vmem:[%s15 + $0x2c] sm:$0xf]
  %v853 = vld [vmem:[%s16] sm:$0x1]
  %v855 = vlaneseq
  %v856 = vshrl.u32 %v855, 7
  %v857 = vsub.s32 0, %v856
  %v858 = vrot.slane %v853, %v857
  %v872 = vunpack.c.l.b16 %v841
  %v873 = vunpack.c.l.b16 %v842
  %v874 = vunpack.c.l.b16 %v843
  %v875 = vunpack.c.l.b16 %v844
  %v876 = vunpack.c.l.b16 %v845
  %v877 = vunpack.c.l.b16 %v846
  %v878 = vunpack.c.l.b16 %v847
  %v879 = vunpack.c.l.b16 %v848
  %v880 = vunpack.c.l.b16 %v849
  %v881 = vunpack.c.l.b16 %v850
  %v882 = vunpack.c.l.b16 %v851
  %v883 = vunpack.c.l.b16 %v852
  %v884 = vpack.c.b16 %v873, %v872
  %v885 = vpack.c.b16 %v875, %v874
  %v886 = vpack.c.b16 %v877, %v876
  %v887 = vpack.c.b16 %v879, %v878
  %v888 = vpack.c.b16 %v881, %v880
  %v889 = vpack.c.b16 %v883, %v882
  %v897 = vsel %vm378, %v840, 0
  %899 = vmatprep.subr.bf16.mxu0 0
  %900 = vmatpush1.bf16.msra.mxu0 0
  %901 = vmatprep.subr.bf16.mxu0 0
  %902 = vmatpush1.bf16.msra.mxu0 0
  %903 = vmatprep.subr.bf16.mxu0 0
  %904 = vmatpush1.bf16.msra.mxu0 %v889
  %905 = vmatprep.subr.bf16.mxu0 0
  %906 = vmatpush1.bf16.msra.mxu0 %v888
  %907 = vmatprep.subr.bf16.mxu0 0
  %908 = vmatpush1.bf16.msra.mxu0 %v887
  %909 = vmatprep.subr.bf16.mxu0 0
  %910 = vmatpush1.bf16.msra.mxu0 %v886
  %911 = vmatprep.subr.bf16.mxu0 0
  %912 = vmatpush1.bf16.msra.mxu0 %v885
  %913 = vmatprep.subr.bf16.mxu0 0
  %914 = vmatpush1.bf16.msra.mxu0 %v884
  %915 = vmatprep.subr.bf16.mxu0 0
  %916 = vmatpush2.bf16.msra.mxu0 0
  %917 = vmatprep.subr.bf16.mxu0 0
  %918 = vmatpush2.bf16.msra.mxu0 0
  %919 = vmatprep.subr.bf16.mxu0 0
  %920 = vmatpush2.bf16.msra.mxu0 0
  %921 = vmatprep.subr.bf16.mxu0 0
  %922 = vmatpush2.bf16.msra.mxu0 0
  %923 = vmatprep.subr.bf16.mxu0 0
  %924 = vmatpush2.bf16.msra.mxu0 0
  %925 = vmatprep.subr.bf16.mxu0 0
  %926 = vmatpush2.bf16.msra.mxu0 0
  %927 = vmatprep.subr.bf16.mxu0 0
  %928 = vmatpush2.bf16.msra.mxu0 0
  %929 = vmatprep.subr.bf16.mxu0 0
  %930 = vmatpush2.bf16.msra.mxu0 0
  %931 = vmatprep.mubr.bf16.mxu0 0
  %932 = vmatmul.mubr.bf16.gmra.mxu0 %v897
  %v933 = vpop.f32.mrf.mxu0
  %v934 = vadd.f32 %v858, %v933
  %v935 = vpop.f32.mrf.mxu0
  %v936 = vpop.f32.mrf.mxu0
  %v937 = vadd.f32 %v858, %v936
  %v938 = vpop.f32.mrf.mxu0
  %939 = vdwg.mxu0
  %v940 = vmax.f32 %v934, 0.0
  %v941 = vmax.f32 %v937, 0.0
  %v942 = vpack.c.bf16 %v941, %v940
  %v943 = vld [vmem:[%s17] sm:$0xf]
  %v944 = vld [vmem:[%s17 + $0x4] sm:$0xf]
  %v945 = vld [vmem:[%s18] sm:$0x1]
  %v947 = vlaneseq
  %v948 = vshrl.u32 %v947, 7
  %v949 = vsub.s32 0, %v948
  %v950 = vrot.slane %v945, %v949
  %v954 = vunpack.c.l.b16 %v943
  %v955 = vunpack.c.l.b16 %v944
  %v956 = vpack.c.b16 %v955, %v954
  %v959 = vsel %vm266, %v942, 0
  %961 = vmatprep.subr.bf16.mxu0 0
  %962 = vmatpush1.bf16.msra.mxu0 0
  %963 = vmatprep.subr.bf16.mxu0 0
  %964 = vmatpush1.bf16.msra.mxu0 0
  %965 = vmatprep.subr.bf16.mxu0 0
  %966 = vmatpush1.bf16.msra.mxu0 0
  %967 = vmatprep.subr.bf16.mxu0 0
  %968 = vmatpush1.bf16.msra.mxu0 0
  %969 = vmatprep.subr.bf16.mxu0 0
  %970 = vmatpush1.bf16.msra.mxu0 0
  %971 = vmatprep.subr.bf16.mxu0 0
  %972 = vmatpush1.bf16.msra.mxu0 0
  %973 = vmatprep.subr.bf16.mxu0 0
  %974 = vmatpush1.bf16.msra.mxu0 0
  %975 = vmatprep.subr.bf16.mxu0 0
  %976 = vmatpush1.bf16.msra.mxu0 %v956
  %977 = vmatprep.subr.bf16.mxu0 0
  %978 = vmatpush2.bf16.msra.mxu0 0
  %979 = vmatprep.subr.bf16.mxu0 0
  %980 = vmatpush2.bf16.msra.mxu0 0
  %981 = vmatprep.subr.bf16.mxu0 0
  %982 = vmatpush2.bf16.msra.mxu0 0
  %983 = vmatprep.subr.bf16.mxu0 0
  %984 = vmatpush2.bf16.msra.mxu0 0
  %985 = vmatprep.subr.bf16.mxu0 0
  %986 = vmatpush2.bf16.msra.mxu0 0
  %987 = vmatprep.subr.bf16.mxu0 0
  %988 = vmatpush2.bf16.msra.mxu0 0
  %989 = vmatprep.subr.bf16.mxu0 0
  %990 = vmatpush2.bf16.msra.mxu0 0
  %991 = vmatprep.subr.bf16.mxu0 0
  %992 = vmatpush2.bf16.msra.mxu0 0
  %993 = vmatprep.mubr.bf16.mxu0 0
  %994 = vmatmul.mubr.bf16.gmra.mxu0 %v959
  %v995 = vpop.f32.mrf.mxu0
  %v996 = vadd.f32 %v950, %v995
  %v997 = vpop.f32.mrf.mxu0
  %v998 = vpop.f32.mrf.mxu0
  %v999 = vadd.f32 %v950, %v998
  %v1000 = vpop.f32.mrf.mxu0
  %1001 = vdwg.mxu0
  %v1002 = vxor.u32 %v996, 2147483648
  %v1003 = vxor.u32 %v999, 2147483648
  %v1004 = vmul.f32 %v1002, 1.442695
  %v1005 = vpow.pop %v1004
  %v1006 = vmul.f32 %v1003, 1.442695
  %v1007 = vpow.pop %v1006
  %v1008 = vadd.f32 %v1005, 1.0
  %v1009 = vadd.f32 %v1007, 1.0
  %v1010 = vrcp.pop %v1008
  %v1011 = vmul.f32 1.0, %v1010
  %v1012 = vrcp.pop %v1009
  %v1013 = vmul.f32 1.0, %v1012
  %1014 = vst.msk [vmem:[%s19] sm:$0xff] %vm739, %v1011
  %1015 = vst.msk [vmem:[%s19 + $0x8] sm:$0xff] %vm739, %v1013
  // Predicated region
  $region78: #{tpu_custom_call.1} parent=0 // pred_check
    _
  $region79: #{tpu_custom_call.1} parent=0 // pred_check_branch
    %1017 = sbr.rel (0) target = $region81
  $region80: #{tpu_custom_call.1} parent=0 // pred_region
    _
  $region81: #{tpu_custom_call.1} parent=0 // pred_fallthru
    _
  // Predicated region
  $region82: #{tpu_custom_call.1} parent=0 // pred_check
    _
  $region83: #{tpu_custom_call.1} parent=0 // pred_check_branch
    %1019 = sbr.rel (0) target = $region85
  $region84: #{tpu_custom_call.1} parent=0 // pred_region
    _
  $region85: #{tpu_custom_call.1} parent=0 // pred_fallthru
    _

</llo_original>
